<compile_context>
chip_gen: v7x
topology: tpu7x:2x2x1
jax: 0.10.0
libtpu: 0.0.40
codegen_flags: <defaults>
</compile_context>

<pallas_src>
import jax
import jax.numpy as jnp
from jax import lax
from jax.experimental import pallas as pl
from jax.experimental.pallas import tpu as pltpu


# --------------------------------------------------------------------------- #
# Kernel
# --------------------------------------------------------------------------- #
def rcab_kernel(x_ref, w1_ref, b1_ref, w2_ref, b2_ref,
                wd_ref, bd_ref, wu_ref, bu_ref, o_ref):
    # x_ref : (B, H, WC) f32     batch-stacked input (also used as the residual)
    # w1/w2 : (3, WC, WC) bf16   per-ky banded 3x3-conv weight blocks
    # b1/b2 : (1, WC) f32
    # wd    : (WC, Cr) f32  (1/(H*W) pre-folded),  bd: (1, Cr) f32
    # wu    : (Cr, WC) f32,  bu: (1, WC) f32
    # o_ref : (B, H, WC) f32
    B, H, WC = x_ref.shape
    M = B * H

    x = x_ref[...]                                        # (B, H, WC) f32
    zrow = jnp.zeros((B, 1, WC), jnp.bfloat16)

    def conv3x3(t_f32, w_ref, b_ref):
        # 3x3 SAME conv on (B, H, WC): the dx taps + horizontal zero padding live
        # on the band of each (WC, WC) weight block; the dy taps are per-image
        # row shifts of the bf16 input. No (M, 3*WC) taps buffer is materialized.
        tb = t_f32.astype(jnp.bfloat16)                   # cast once, reuse
        up = jnp.concatenate([zrow, tb[:, :H - 1]], axis=1)   # row h -> t[h-1]
        dn = jnp.concatenate([tb[:, 1:], zrow], axis=1)       # row h -> t[h+1]
        y = jnp.dot(up.reshape(M, WC), w_ref[0],
                    preferred_element_type=jnp.float32)
        y += jnp.dot(tb.reshape(M, WC), w_ref[1],
                     preferred_element_type=jnp.float32)
        y += jnp.dot(dn.reshape(M, WC), w_ref[2],
                     preferred_element_type=jnp.float32)
        return y + b_ref[...]                             # (M, WC) f32

    # ---- conv1 (3x3 SAME) + ReLU ----
    h = jnp.maximum(conv3x3(x, w1_ref, b1_ref), 0.0).reshape(B, H, WC)

    # ---- conv2 (3x3 SAME) ----
    r = conv3x3(h, w2_ref, b2_ref).reshape(B, H, WC)

    # ---- channel attention (per image in the batch block) ----
    # Global average pool: 1/(H*W) is folded into wd; summing against the
    # W-tiled (WC, Cr) weight also sums over w, so no (W, C) reshape is needed.
    pooled = jnp.sum(r, axis=1)                           # (B, WC)
    z = jnp.maximum(
        jnp.dot(pooled, wd_ref[...], preferred_element_type=jnp.float32)
        + bd_ref[...], 0.0)                               # (B, Cr)
    s = jax.nn.sigmoid(
        jnp.dot(z, wu_ref[...], preferred_element_type=jnp.float32)
        + bu_ref[...])                                    # (B, WC) per-channel scale, tiled over w

    # ---- scale + residual (residual from the same block: single HBM read) ----
    o_ref[...] = r * s[:, None, :] + x


# --------------------------------------------------------------------------- #
# One-time weight preparation (hoisted out of the forward hot path)
# --------------------------------------------------------------------------- #
def _banded_conv_weight(w_oihw, W):
    """(C_out, C_in, 3, 3) OIHW conv weight -> (3, W*C, W*C) per-ky banded blocks.

    blk[ky, wi*C + ci, wo*C + co] = w[co, ci, ky, wi - wo + 1] when |wi - wo| <= 1,
    else 0.  A 3x3 SAME conv on an (H, W*C) image is then three matmuls of the
    dy-shifted rows against these blocks (the band handles dx taps and the
    horizontal zero padding automatically).
    """
    C = w_oihw.shape[0]
    w_t = jnp.transpose(w_oihw, (2, 3, 1, 0))             # (ky, kx, ci, co)
    wi = jnp.arange(W)[:, None]
    wo = jnp.arange(W)[None, :]
    kx = wi - wo + 1
    valid = (kx >= 0) & (kx <= 2)
    big = w_t[:, jnp.clip(kx, 0, 2)]                      # (3, W, W, ci, co)
    big = big * valid[None, :, :, None, None].astype(w_t.dtype)
    big = jnp.transpose(big, (0, 1, 3, 2, 4))             # (ky, wi, ci, wo, co)
    return big.reshape(3, W * C, W * C)
    # TODO(synk): for production sizes (n_feat >= 48, W >= 32) tile the output
    # columns of these blocks over an inner "arbitrary" grid axis (accumulator
    # pattern) so only a weight slab is resident per step on v7x's 64 MiB VMEM.


def prepare_rcab_params(params, H, W):
    """Build the kernel-side weights once (call outside the per-step hot path)."""
    C = params["b1"].shape[0]
    WC = W * C
    return {
        "w1": _banded_conv_weight(params["w1"], W).astype(jnp.bfloat16),
        "w2": _banded_conv_weight(params["w2"], W).astype(jnp.bfloat16),
        "b1": jnp.tile(params["b1"], W).reshape(1, WC).astype(jnp.float32),
        "b2": jnp.tile(params["b2"], W).reshape(1, WC).astype(jnp.float32),
        # CA weights kept in the (., W*C) lane layout; 1/(H*W) of the global
        # average pool folded into the down-projection.
        "wd": (jnp.tile(params["wd"].T, (W, 1)) / float(H * W)).astype(jnp.float32),
        "bd": params["bd"].reshape(1, -1).astype(jnp.float32),
        "wu": jnp.tile(params["wu"].T, (1, W)).astype(jnp.float32),
        "bu": jnp.tile(params["bu"], W).reshape(1, WC).astype(jnp.float32),
    }


# --------------------------------------------------------------------------- #
# Forward
# --------------------------------------------------------------------------- #
def _pick_batch_block(n, h, target_m=256):
    """Largest divisor b of n with b*h <= target_m (MXU depth), while keeping
    >= 2 grid steps when n >= 2 so the 'parallel' batch axis can split across
    the two v7x TensorCores."""
    best = 1
    for b in range(1, n + 1):
        if n % b:
            continue
        if b * h > target_m:
            break
        if n >= 2 and n // b < 2:
            break
        best = b
    return best


def rcab_forward_packed(x_wc, prep):
    """Hot path: x_wc is (N, H, W*C) lane-dense activations; returns same layout."""
    N, H, WC = x_wc.shape
    Cr = prep["bd"].shape[1]
    assert WC % 128 == 0, "W*C must be a multiple of 128 (lane-dense stores)"
    assert H % 8 == 0, "H must be a multiple of 8 (sublane tiling)"
    # TODO(synk): add a padding path for shapes violating the (8,128) constraints.

    b_blk = _pick_batch_block(N, H)
    grid = (N // b_blk,)

    # Per-step VMEM accounting: double-buffered activation in/out blocks,
    # single-buffered grid-invariant weights, headroom for in-kernel temporaries.
    act_bytes = b_blk * H * WC * 4
    weight_bytes = 2 * 3 * WC * WC * 2 + (WC * max(Cr, 128) + 4 * 8 * WC) * 4
    est = 4 * act_bytes + weight_bytes + 10 * act_bytes
    vmem_limit = int(min(64 * 2 ** 20, max(16 * 2 ** 20, 2 * est)))

    inv = pl.Buffered(1)   # grid-invariant params: no pointless double-buffering
    return pl.pallas_call(
        rcab_kernel,
        out_shape=jax.ShapeDtypeStruct((N, H, WC), jnp.float32),
        grid=grid,
        in_specs=[
            pl.BlockSpec((b_blk, H, WC), lambda n: (n, 0, 0)),
            pl.BlockSpec((3, WC, WC), lambda n: (0, 0, 0), pipeline_mode=inv),
            pl.BlockSpec((1, WC), lambda n: (0, 0), pipeline_mode=inv),
            pl.BlockSpec((3, WC, WC), lambda n: (0, 0, 0), pipeline_mode=inv),
            pl.BlockSpec((1, WC), lambda n: (0, 0), pipeline_mode=inv),
            pl.BlockSpec((WC, Cr), lambda n: (0, 0), pipeline_mode=inv),
            pl.BlockSpec((1, Cr), lambda n: (0, 0), pipeline_mode=inv),
            pl.BlockSpec((Cr, WC), lambda n: (0, 0), pipeline_mode=inv),
            pl.BlockSpec((1, WC), lambda n: (0, 0), pipeline_mode=inv),
        ],
        out_specs=pl.BlockSpec((b_blk, H, WC), lambda n: (n, 0, 0)),
        compiler_params=pltpu.CompilerParams(
            dimension_semantics=("parallel",),            # megacore split on v7x
            vmem_limit_bytes=vmem_limit),
    )(x_wc, prep["w1"], prep["b1"], prep["w2"], prep["b2"],
      prep["wd"], prep["bd"], prep["wu"], prep["bu"])


@jax.jit
def rcab_forward(x_nchw, prep):
    """RCAB forward. x_nchw: (N, C, H, W) float32. Returns (N, C, H, W).

    Layout conversion lives at the module boundary; for a stack of RCABs keep
    activations in (N, H, W*C) across the whole group and call
    rcab_forward_packed directly to avoid per-block HBM relayouts.
    """
    N, C, H, W = x_nchw.shape
    x_wc = jnp.transpose(x_nchw, (0, 2, 3, 1)).reshape(N, H, W * C).astype(jnp.float32)
    out = rcab_forward_packed(x_wc, prep)
    return jnp.transpose(out.reshape(N, H, W, C), (0, 3, 1, 2))


# --------------------------------------------------------------------------- #
# Plain-JAX reference (mirrors the PyTorch module) and parameter factory
# --------------------------------------------------------------------------- #
def rcab_reference(x_nchw, params):
    def conv2d(x, w, b):
        y = lax.conv_general_dilated(
            x, w, window_strides=(1, 1), padding="SAME",
            dimension_numbers=("NCHW", "OIHW", "NCHW"))
        return y + b[None, :, None, None]

    h = jax.nn.relu(conv2d(x_nchw, params["w1"], params["b1"]))
    r = conv2d(h, params["w2"], params["b2"])
    pooled = jnp.mean(r, axis=(2, 3), keepdims=True)            # (N,C,1,1)
    z = jax.nn.relu(jnp.einsum("ncij,dc->ndij", pooled, params["wd"])
                    + params["bd"][None, :, None, None])
    s = jax.nn.sigmoid(jnp.einsum("ndij,cd->ncij", z, params["wu"])
                       + params["bu"][None, :, None, None])
    return r * s + x_nchw


def make_params(key, n_feat, kernel_size, reduction):
    assert kernel_size == 3, "kernel implemented for kernel_size=3"
    cr = n_feat // reduction
    ks = jax.random.split(key, 6)
    scale = 0.05
    return {
        "w1": scale * jax.random.normal(ks[0], (n_feat, n_feat, 3, 3), jnp.float32),
        "b1": scale * jax.random.normal(ks[1], (n_feat,), jnp.float32),
        "w2": scale * jax.random.normal(ks[2], (n_feat, n_feat, 3, 3), jnp.float32),
        "b2": scale * jax.random.normal(ks[3], (n_feat,), jnp.float32),
        "wd": scale * jax.random.normal(ks[4], (cr, n_feat), jnp.float32),
        "bd": jnp.zeros((cr,), jnp.float32),
        "wu": scale * jax.random.normal(ks[5], (n_feat, cr), jnp.float32),
        "bu": jnp.zeros((n_feat,), jnp.float32),
    }


if __name__ == "__main__":
    N, C, H, W = 8, 16, 16, 16          # W*C = 256 (lane-dense), M per block = 64
    reduction = 4
    key = jax.random.PRNGKey(0)
    kx, kp = jax.random.split(key)
    x = jax.random.normal(kx, (N, C, H, W), jnp.float32)
    params = make_params(kp, n_feat=C, kernel_size=3, reduction=reduction)

    prep = prepare_rcab_params(params, H, W)   # one-time weight prep (hoisted)

    out = jax.block_until_ready(rcab_forward(x, prep))
    ref = rcab_reference(x, params)

    assert out.shape == (N, C, H, W)
    max_err = float(jnp.max(jnp.abs(out - ref)))
    assert max_err < 2e-2, f"mismatch vs reference: {max_err}"  # bf16 MXU operands

    print("KERNEL_OK")
</pallas_src>

<mosaic_0001>
module attributes {stable_mosaic.version = 11 : i64} {
  func.func @rcab_kernel(%arg0: i32, %arg1: memref<4x16x256xf32, #tpu.memory_space<vmem>>, %arg2: memref<3x256x256xbf16, #tpu.memory_space<vmem>>, %arg3: memref<1x256xf32, #tpu.memory_space<vmem>>, %arg4: memref<3x256x256xbf16, #tpu.memory_space<vmem>>, %arg5: memref<1x256xf32, #tpu.memory_space<vmem>>, %arg6: memref<256x4xf32, #tpu.memory_space<vmem>>, %arg7: memref<1x4xf32, #tpu.memory_space<vmem>>, %arg8: memref<4x256xf32, #tpu.memory_space<vmem>>, %arg9: memref<1x256xf32, #tpu.memory_space<vmem>>, %arg10: memref<4x16x256xf32, #tpu.memory_space<vmem>>) attributes {dimension_semantics = [#tpu.dimension_semantics<parallel>], iteration_bounds = array<i64: 2>, scalar_prefetch = 0 : i64, scratch_operands = 0 : i64, tpu.core_type = #tpu.core_type<tc>, window_params = [{transform_indices = @transform_0, window_bounds = array<i64: 4, 16, 256>}, {pipeline_mode = #tpu.pipeline_mode<synchronous>, transform_indices = @transform_1, window_bounds = array<i64: 3, 256, 256>}, {pipeline_mode = #tpu.pipeline_mode<synchronous>, transform_indices = @transform_2, window_bounds = array<i64: 1, 256>}, {pipeline_mode = #tpu.pipeline_mode<synchronous>, transform_indices = @transform_3, window_bounds = array<i64: 3, 256, 256>}, {pipeline_mode = #tpu.pipeline_mode<synchronous>, transform_indices = @transform_4, window_bounds = array<i64: 1, 256>}, {pipeline_mode = #tpu.pipeline_mode<synchronous>, transform_indices = @transform_5, window_bounds = array<i64: 256, 4>}, {pipeline_mode = #tpu.pipeline_mode<synchronous>, transform_indices = @transform_6, window_bounds = array<i64: 1, 4>}, {pipeline_mode = #tpu.pipeline_mode<synchronous>, transform_indices = @transform_7, window_bounds = array<i64: 4, 256>}, {pipeline_mode = #tpu.pipeline_mode<synchronous>, transform_indices = @transform_8, window_bounds = array<i64: 1, 256>}, {transform_indices = @transform_9, window_bounds = array<i64: 4, 16, 256>}]} {
    %c0 = arith.constant 0 : index
    %c0_0 = arith.constant 0 : index
    %c0_1 = arith.constant 0 : index
    %0 = vector.load %arg1[%c0, %c0_0, %c0_1] : memref<4x16x256xf32, #tpu.memory_space<vmem>>, vector<4x16x256xf32>
    %cst = arith.constant 0.000000e+00 : bf16
    %1 = vector.broadcast %cst : bf16 to vector<4x1x256xbf16>
    %2 = arith.truncf %0 : vector<4x16x256xf32> to vector<4x16x256xbf16>
    %3 = vector.extract_strided_slice %2 {offsets = [0, 0, 0], sizes = [4, 15, 256], strides = [1, 1, 1]} : vector<4x16x256xbf16> to vector<4x15x256xbf16>
    %4 = tpu.concatenate %1, %3 in 1 : vector<4x1x256xbf16>, vector<4x15x256xbf16> -> vector<4x16x256xbf16>
    %5 = vector.extract_strided_slice %2 {offsets = [0, 1, 0], sizes = [4, 15, 256], strides = [1, 1, 1]} : vector<4x16x256xbf16> to vector<4x15x256xbf16>
    %6 = tpu.concatenate %5, %1 in 1 : vector<4x15x256xbf16>, vector<4x1x256xbf16> -> vector<4x16x256xbf16>
    %7 = vector.shape_cast %4 : vector<4x16x256xbf16> to vector<64x256xbf16>
    %c0_2 = arith.constant 0 : index
    %c0_3 = arith.constant 0 : index
    %c0_4 = arith.constant 0 : index
    %8 = vector.load %arg2[%c0_2, %c0_3, %c0_4] : memref<3x256x256xbf16, #tpu.memory_space<vmem>>, vector<1x256x256xbf16>
    %9 = vector.shape_cast %8 : vector<1x256x256xbf16> to vector<256x256xbf16>
    %cst_5 = arith.constant dense<0.000000e+00> : vector<64x256xf32>
    %10 = tpu.matmul %7, %9, %cst_5 {dimension_numbers = #tpu.dot_dimension_numbers<[1], [0], [0], [1], [0, 0, 1, 1], [], []>} : vector<64x256xbf16>, vector<256x256xbf16>, vector<64x256xf32> -> vector<64x256xf32>
    %11 = vector.shape_cast %2 : vector<4x16x256xbf16> to vector<64x256xbf16>
    %c1 = arith.constant 1 : index
    %c0_6 = arith.constant 0 : index
    %c0_7 = arith.constant 0 : index
    %12 = vector.load %arg2[%c1, %c0_6, %c0_7] : memref<3x256x256xbf16, #tpu.memory_space<vmem>>, vector<1x256x256xbf16>
    %13 = vector.shape_cast %12 : vector<1x256x256xbf16> to vector<256x256xbf16>
    %cst_8 = arith.constant dense<0.000000e+00> : vector<64x256xf32>
    %14 = tpu.matmul %11, %13, %cst_8 {dimension_numbers = #tpu.dot_dimension_numbers<[1], [0], [0], [1], [0, 0, 1, 1], [], []>} : vector<64x256xbf16>, vector<256x256xbf16>, vector<64x256xf32> -> vector<64x256xf32>
    %15 = arith.addf %10, %14 : vector<64x256xf32>
    %16 = vector.shape_cast %6 : vector<4x16x256xbf16> to vector<64x256xbf16>
    %c2 = arith.constant 2 : index
    %c0_9 = arith.constant 0 : index
    %c0_10 = arith.constant 0 : index
    %17 = vector.load %arg2[%c2, %c0_9, %c0_10] : memref<3x256x256xbf16, #tpu.memory_space<vmem>>, vector<1x256x256xbf16>
    %18 = vector.shape_cast %17 : vector<1x256x256xbf16> to vector<256x256xbf16>
    %cst_11 = arith.constant dense<0.000000e+00> : vector<64x256xf32>
    %19 = tpu.matmul %16, %18, %cst_11 {dimension_numbers = #tpu.dot_dimension_numbers<[1], [0], [0], [1], [0, 0, 1, 1], [], []>} : vector<64x256xbf16>, vector<256x256xbf16>, vector<64x256xf32> -> vector<64x256xf32>
    %20 = arith.addf %15, %19 : vector<64x256xf32>
    %c0_12 = arith.constant 0 : index
    %c0_13 = arith.constant 0 : index
    %21 = vector.load %arg3[%c0_12, %c0_13] : memref<1x256xf32, #tpu.memory_space<vmem>>, vector<1x256xf32>
    %22 = vector.broadcast %21 : vector<1x256xf32> to vector<64x256xf32>
    %23 = arith.addf %20, %22 : vector<64x256xf32>
    %cst_14 = arith.constant 0.000000e+00 : f32
    %24 = vector.broadcast %cst_14 : f32 to vector<64x256xf32>
    %25 = arith.maximumf %23, %24 : vector<64x256xf32>
    %26 = vector.shape_cast %25 : vector<64x256xf32> to vector<4x16x256xf32>
    %27 = arith.truncf %26 : vector<4x16x256xf32> to vector<4x16x256xbf16>
    %28 = vector.extract_strided_slice %27 {offsets = [0, 0, 0], sizes = [4, 15, 256], strides = [1, 1, 1]} : vector<4x16x256xbf16> to vector<4x15x256xbf16>
    %29 = tpu.concatenate %1, %28 in 1 : vector<4x1x256xbf16>, vector<4x15x256xbf16> -> vector<4x16x256xbf16>
    %30 = vector.extract_strided_slice %27 {offsets = [0, 1, 0], sizes = [4, 15, 256], strides = [1, 1, 1]} : vector<4x16x256xbf16> to vector<4x15x256xbf16>
    %31 = tpu.concatenate %30, %1 in 1 : vector<4x15x256xbf16>, vector<4x1x256xbf16> -> vector<4x16x256xbf16>
    %32 = vector.shape_cast %29 : vector<4x16x256xbf16> to vector<64x256xbf16>
    %c0_15 = arith.constant 0 : index
    %c0_16 = arith.constant 0 : index
    %c0_17 = arith.constant 0 : index
    %33 = vector.load %arg4[%c0_15, %c0_16, %c0_17] : memref<3x256x256xbf16, #tpu.memory_space<vmem>>, vector<1x256x256xbf16>
    %34 = vector.shape_cast %33 : vector<1x256x256xbf16> to vector<256x256xbf16>
    %cst_18 = arith.constant dense<0.000000e+00> : vector<64x256xf32>
    %35 = tpu.matmul %32, %34, %cst_18 {dimension_numbers = #tpu.dot_dimension_numbers<[1], [0], [0], [1], [0, 0, 1, 1], [], []>} : vector<64x256xbf16>, vector<256x256xbf16>, vector<64x256xf32> -> vector<64x256xf32>
    %36 = vector.shape_cast %27 : vector<4x16x256xbf16> to vector<64x256xbf16>
    %c1_19 = arith.constant 1 : index
    %c0_20 = arith.constant 0 : index
    %c0_21 = arith.constant 0 : index
    %37 = vector.load %arg4[%c1_19, %c0_20, %c0_21] : memref<3x256x256xbf16, #tpu.memory_space<vmem>>, vector<1x256x256xbf16>
    %38 = vector.shape_cast %37 : vector<1x256x256xbf16> to vector<256x256xbf16>
    %cst_22 = arith.constant dense<0.000000e+00> : vector<64x256xf32>
    %39 = tpu.matmul %36, %38, %cst_22 {dimension_numbers = #tpu.dot_dimension_numbers<[1], [0], [0], [1], [0, 0, 1, 1], [], []>} : vector<64x256xbf16>, vector<256x256xbf16>, vector<64x256xf32> -> vector<64x256xf32>
    %40 = arith.addf %35, %39 : vector<64x256xf32>
    %41 = vector.shape_cast %31 : vector<4x16x256xbf16> to vector<64x256xbf16>
    %c2_23 = arith.constant 2 : index
    %c0_24 = arith.constant 0 : index
    %c0_25 = arith.constant 0 : index
    %42 = vector.load %arg4[%c2_23, %c0_24, %c0_25] : memref<3x256x256xbf16, #tpu.memory_space<vmem>>, vector<1x256x256xbf16>
    %43 = vector.shape_cast %42 : vector<1x256x256xbf16> to vector<256x256xbf16>
    %cst_26 = arith.constant dense<0.000000e+00> : vector<64x256xf32>
    %44 = tpu.matmul %41, %43, %cst_26 {dimension_numbers = #tpu.dot_dimension_numbers<[1], [0], [0], [1], [0, 0, 1, 1], [], []>} : vector<64x256xbf16>, vector<256x256xbf16>, vector<64x256xf32> -> vector<64x256xf32>
    %45 = arith.addf %40, %44 : vector<64x256xf32>
    %c0_27 = arith.constant 0 : index
    %c0_28 = arith.constant 0 : index
    %46 = vector.load %arg5[%c0_27, %c0_28] : memref<1x256xf32, #tpu.memory_space<vmem>>, vector<1x256xf32>
    %47 = vector.broadcast %46 : vector<1x256xf32> to vector<64x256xf32>
    %48 = arith.addf %45, %47 : vector<64x256xf32>
    %49 = vector.shape_cast %48 : vector<64x256xf32> to vector<4x16x256xf32>
    %cst_29 = arith.constant dense<0.000000e+00> : vector<4x256xf32>
    %50 = vector.multi_reduction <add>, %49, %cst_29 [1] : vector<4x16x256xf32> to vector<4x256xf32>
    %c0_30 = arith.constant 0 : index
    %c0_31 = arith.constant 0 : index
    %51 = vector.load %arg6[%c0_30, %c0_31] : memref<256x4xf32, #tpu.memory_space<vmem>>, vector<256x4xf32>
    %cst_32 = arith.constant dense<0.000000e+00> : vector<4x4xf32>
    %52 = tpu.matmul %50, %51, %cst_32 {dimension_numbers = #tpu.dot_dimension_numbers<[1], [0], [0], [1], [0, 0, 1, 1], [], []>} : vector<4x256xf32>, vector<256x4xf32>, vector<4x4xf32> -> vector<4x4xf32>
    %c0_33 = arith.constant 0 : index
    %c0_34 = arith.constant 0 : index
    %53 = vector.load %arg7[%c0_33, %c0_34] : memref<1x4xf32, #tpu.memory_space<vmem>>, vector<1x4xf32>
    %54 = vector.broadcast %53 : vector<1x4xf32> to vector<4x4xf32>
    %55 = arith.addf %52, %54 : vector<4x4xf32>
    %cst_35 = arith.constant 0.000000e+00 : f32
    %56 = vector.broadcast %cst_35 : f32 to vector<4x4xf32>
    %57 = arith.maximumf %55, %56 : vector<4x4xf32>
    %c0_36 = arith.constant 0 : index
    %c0_37 = arith.constant 0 : index
    %58 = vector.load %arg8[%c0_36, %c0_37] : memref<4x256xf32, #tpu.memory_space<vmem>>, vector<4x256xf32>
    %cst_38 = arith.constant dense<0.000000e+00> : vector<4x256xf32>
    %59 = tpu.matmul %57, %58, %cst_38 {dimension_numbers = #tpu.dot_dimension_numbers<[1], [0], [0], [1], [0, 0, 1, 1], [], []>} : vector<4x4xf32>, vector<4x256xf32>, vector<4x256xf32> -> vector<4x256xf32>
    %c0_39 = arith.constant 0 : index
    %c0_40 = arith.constant 0 : index
    %60 = vector.load %arg9[%c0_39, %c0_40] : memref<1x256xf32, #tpu.memory_space<vmem>>, vector<1x256xf32>
    %61 = vector.broadcast %60 : vector<1x256xf32> to vector<4x256xf32>
    %62 = arith.addf %59, %61 : vector<4x256xf32>
    %63 = arith.negf %62 : vector<4x256xf32>
    %64 = math.exp %63 : vector<4x256xf32>
    %cst_41 = arith.constant 1.000000e+00 : f32
    %65 = vector.broadcast %cst_41 : f32 to vector<4x256xf32>
    %66 = arith.addf %65, %64 : vector<4x256xf32>
    %67 = arith.divf %65, %66 : vector<4x256xf32>
    %68 = vector.shape_cast %67 : vector<4x256xf32> to vector<4x1x256xf32>
    %69 = vector.broadcast %68 : vector<4x1x256xf32> to vector<4x16x256xf32>
    %70 = arith.mulf %49, %69 : vector<4x16x256xf32>
    %71 = arith.addf %70, %0 : vector<4x16x256xf32>
    %c0_42 = arith.constant 0 : index
    %c0_43 = arith.constant 0 : index
    %c0_44 = arith.constant 0 : index
    %72 = vector.load %arg10[%c0_42, %c0_43, %c0_44] : memref<4x16x256xf32, #tpu.memory_space<vmem>>, vector<4x16x256xf32>
    tpu.vector_store %arg10[%c0_42, %c0_43, %c0_44], %71 {strides = array<i32>} : memref<4x16x256xf32, #tpu.memory_space<vmem>>, vector<4x16x256xf32>,
    return
  }
  func.func @transform_0(%arg0: i32) -> (i32, i32, i32) {
    %c0_i32 = arith.constant 0 : i32
    %c0_i32_0 = arith.constant 0 : i32
    %c0_i32_1 = arith.constant 0 : i32
    return %arg0, %c0_i32, %c0_i32_0 : i32, i32, i32
  }
  func.func @transform_1(%arg0: i32) -> (i32, i32, i32) {
    %c0_i32 = arith.constant 0 : i32
    %c0_i32_0 = arith.constant 0 : i32
    %c0_i32_1 = arith.constant 0 : i32
    %c0_i32_2 = arith.constant 0 : i32
    return %c0_i32, %c0_i32_0, %c0_i32_1 : i32, i32, i32
  }
  func.func @transform_2(%arg0: i32) -> (i32, i32) {
    %c0_i32 = arith.constant 0 : i32
    %c0_i32_0 = arith.constant 0 : i32
    %c0_i32_1 = arith.constant 0 : i32
    return %c0_i32, %c0_i32_0 : i32, i32
  }
  func.func @transform_3(%arg0: i32) -> (i32, i32, i32) {
    %c0_i32 = arith.constant 0 : i32
    %c0_i32_0 = arith.constant 0 : i32
    %c0_i32_1 = arith.constant 0 : i32
    %c0_i32_2 = arith.constant 0 : i32
    return %c0_i32, %c0_i32_0, %c0_i32_1 : i32, i32, i32
  }
  func.func @transform_4(%arg0: i32) -> (i32, i32) {
    %c0_i32 = arith.constant 0 : i32
    %c0_i32_0 = arith.constant 0 : i32
    %c0_i32_1 = arith.constant 0 : i32
    return %c0_i32, %c0_i32_0 : i32, i32
  }
  func.func @transform_5(%arg0: i32) -> (i32, i32) {
    %c0_i32 = arith.constant 0 : i32
    %c0_i32_0 = arith.constant 0 : i32
    %c0_i32_1 = arith.constant 0 : i32
    return %c0_i32, %c0_i32_0 : i32, i32
  }
  func.func @transform_6(%arg0: i32) -> (i32, i32) {
    %c0_i32 = arith.constant 0 : i32
    %c0_i32_0 = arith.constant 0 : i32
    %c0_i32_1 = arith.constant 0 : i32
    return %c0_i32, %c0_i32_0 : i32, i32
  }
  func.func @transform_7(%arg0: i32) -> (i32, i32) {
    %c0_i32 = arith.constant 0 : i32
    %c0_i32_0 = arith.constant 0 : i32
    %c0_i32_1 = arith.constant 0 : i32
    return %c0_i32, %c0_i32_0 : i32, i32
  }
  func.func @transform_8(%arg0: i32) -> (i32, i32) {
    %c0_i32 = arith.constant 0 : i32
    %c0_i32_0 = arith.constant 0 : i32
    %c0_i32_1 = arith.constant 0 : i32
    return %c0_i32, %c0_i32_0 : i32, i32
  }
  func.func @transform_9(%arg0: i32) -> (i32, i32, i32) {
    %c0_i32 = arith.constant 0 : i32
    %c0_i32_0 = arith.constant 0 : i32
    %c0_i32_1 = arith.constant 0 : i32
    return %arg0, %c0_i32, %c0_i32_0 : i32, i32, i32
  }
}

</mosaic_0001>

<llo_original>
// kernel: rcab_forward.1
$region0: #{rcab_forward.1}
  #allocation0 [shape = 'u32[]', space=smem, size = 0x4, offset = 0x4, fixed_abs, tag = 'smem constant byte address 0x4 - core index']
  #allocation1 [shape = 'u32[144,128]{1,0:T(1,128)}', space=vmem, size = 0x12000, scoped, tag = 'internal scratch']
  %s0 = inlined_call_operand.vmem [shape: f32[8,16,256], index: 0, kind: input, shape index: {}]
  %s1 = inlined_call_operand.vmem [shape: bf16[3,256,256], index: 1, kind: input, shape index: {}]
  %s2 = inlined_call_operand.vmem [shape: f32[1,256], index: 2, kind: input, shape index: {}]
  %s3 = inlined_call_operand.vmem [shape: bf16[3,256,256], index: 3, kind: input, shape index: {}]
  %s4 = inlined_call_operand.vmem [shape: f32[1,256], index: 4, kind: input, shape index: {}]
  %s5 = inlined_call_operand.vmem [shape: f32[256,4], index: 5, kind: input, shape index: {}]
  %s6 = inlined_call_operand.vmem [shape: f32[1,4], index: 6, kind: input, shape index: {}]
  %s7 = inlined_call_operand.vmem [shape: f32[4,256], index: 7, kind: input, shape index: {}]
  %s8 = inlined_call_operand.vmem [shape: f32[1,256], index: 8, kind: input, shape index: {}]
  %s9 = inlined_call_operand.vmem [shape: f32[8,16,256], index: 9, kind: output, shape index: {}]
  %s10 = sld [smem:[#allocation0]]
  $region69: #{rcab_forward.1} parent=0
    _
  %s12 = ssub.s32 1, %s10
  %s13 = scalar_select 0, %s12, %s10
  loop: start=0, step=1, limit=4
  $region2: #{rcab_forward.1} parent=0 // loop_pre_header
    _
  $region3: #{rcab_forward.1} parent=0 // loop_header
    %s15 = sphi 0, %s19
    %p16 = scmp.ge.s32.totalorder %s15, 4
    %s25 = sphi 0, %s27
    %s28 = sphi 0, %s25
    %s29 = sphi 0, %s28
    %s45 = sphi 0, %s29
    %s49 = sphi 0, %s49
    %s51 = sphi 0, %s49
    %s52 = sphi 0, %s51
    %s66 = sphi 0, %s52
    %s70 = sphi 0, %s70
    %s72 = sphi 0, %s70
    %s73 = sphi 0, %s72
    %s87 = sphi 0, %s73
    %s91 = sphi 0, %s91
    %s93 = sphi 0, %s91
    %s94 = sphi 0, %s93
    %s108 = sphi 0, %s94
    %s112 = sphi 0, %s112
    %s114 = sphi 0, %s112
    %s115 = sphi 0, %s114
    %s129 = sphi 0, %s115
    %s133 = sphi 0, %s133
    %s135 = sphi 0, %s133
    %s136 = sphi 0, %s135
    %s150 = sphi 0, %s136
    %s154 = sphi 0, %s154
    %s156 = sphi 0, %s154
    %s157 = sphi 0, %s156
    %s171 = sphi 0, %s157
    %s175 = sphi 0, %s175
    %s177 = sphi 0, %s175
    %s178 = sphi 0, %s177
    %s192 = sphi 0, %s178
    %s196 = sphi 0, %s196
    %s198 = sphi 0, %s196
    %s199 = sphi 0, %s198
    %s213 = sphi 0, %s199
    %s219 = sphi 0, %s221
    %s222 = sphi 0, %s219
    %s223 = sphi 0, %s222
    %s239 = sphi 0, %s223
  $region4: #{rcab_forward.1} parent=0 // loop_header_branch
    %18 = sbr.rel (%p16) target = $region8
  $region5: #{rcab_forward.1} parent=0 // loop_body
    %s20 = ssub.s32 %s15, 1
    %s21 = ssub.s32 %s15, 2
    %s22 = sadd.s32 %s15, 1
    %s23 = ssub.s32 %s15, %s22
    %p24 = scmp.eq.s32.totalorder %s23, 0
    %s26 = sadd.s32 %s25, 1
    %s27 = scalar_select %p24, %s25, %s26
    %p30 = pneg %p24
    %p31 = scmp.eq.s32.totalorder %s15, 1
    %p32 = por %p30, %p31
    %p33 = scmp.ne.s32.totalorder %s25, %s28
    %p34 = scmp.eq.s32.totalorder %s15, 0
    %p35 = por %p33, %p34
    %p36 = scmp.ne.s32.totalorder %s25, %s28
    %p37 = scmp.eq.s32.totalorder %s20, 1
    %p38 = por %p36, %p37
    %p39 = scmp.ne.s32.totalorder %s28, %s29
    %p40 = scmp.eq.s32.totalorder %s20, 0
    %p41 = por %p39, %p40
    %p42 = scmp.ne.s32.totalorder %s28, %s29
    %p43 = scmp.eq.s32.totalorder %s21, 1
    %p44 = por %p42, %p43
    %p46 = scmp.ne.s32.totalorder %s29, %s45
    %p47 = scmp.eq.s32.totalorder %s21, 0
    %p48 = por %p46, %p47
    %s50 = sadd.s32 %s49, 1
    %p53 = scmp.eq.s32.totalorder %s15, 1
    %p54 = scmp.ne.s32.totalorder %s49, %s51
    %p55 = scmp.eq.s32.totalorder %s15, 0
    %p56 = por %p54, %p55
    %p57 = scmp.ne.s32.totalorder %s49, %s51
    %p58 = scmp.eq.s32.totalorder %s20, 1
    %p59 = por %p57, %p58
    %p60 = scmp.ne.s32.totalorder %s51, %s52
    %p61 = scmp.eq.s32.totalorder %s20, 0
    %p62 = por %p60, %p61
    %p63 = scmp.ne.s32.totalorder %s51, %s52
    %p64 = scmp.eq.s32.totalorder %s21, 1
    %p65 = por %p63, %p64
    %p67 = scmp.ne.s32.totalorder %s52, %s66
    %p68 = scmp.eq.s32.totalorder %s21, 0
    %p69 = por %p67, %p68
    %s71 = sadd.s32 %s70, 1
    %p74 = scmp.eq.s32.totalorder %s15, 1
    %p75 = scmp.ne.s32.totalorder %s70, %s72
    %p76 = scmp.eq.s32.totalorder %s15, 0
    %p77 = por %p75, %p76
    %p78 = scmp.ne.s32.totalorder %s70, %s72
    %p79 = scmp.eq.s32.totalorder %s20, 1
    %p80 = por %p78, %p79
    %p81 = scmp.ne.s32.totalorder %s72, %s73
    %p82 = scmp.eq.s32.totalorder %s20, 0
    %p83 = por %p81, %p82
    %p84 = scmp.ne.s32.totalorder %s72, %s73
    %p85 = scmp.eq.s32.totalorder %s21, 1
    %p86 = por %p84, %p85
    %p88 = scmp.ne.s32.totalorder %s73, %s87
    %p89 = scmp.eq.s32.totalorder %s21, 0
    %p90 = por %p88, %p89
    %s92 = sadd.s32 %s91, 1
    %p95 = scmp.eq.s32.totalorder %s15, 1
    %p96 = scmp.ne.s32.totalorder %s91, %s93
    %p97 = scmp.eq.s32.totalorder %s15, 0
    %p98 = por %p96, %p97
    %p99 = scmp.ne.s32.totalorder %s91, %s93
    %p100 = scmp.eq.s32.totalorder %s20, 1
    %p101 = por %p99, %p100
    %p102 = scmp.ne.s32.totalorder %s93, %s94
    %p103 = scmp.eq.s32.totalorder %s20, 0
    %p104 = por %p102, %p103
    %p105 = scmp.ne.s32.totalorder %s93, %s94
    %p106 = scmp.eq.s32.totalorder %s21, 1
    %p107 = por %p105, %p106
    %p109 = scmp.ne.s32.totalorder %s94, %s108
    %p110 = scmp.eq.s32.totalorder %s21, 0
    %p111 = por %p109, %p110
    %s113 = sadd.s32 %s112, 1
    %p116 = scmp.eq.s32.totalorder %s15, 1
    %p117 = scmp.ne.s32.totalorder %s112, %s114
    %p118 = scmp.eq.s32.totalorder %s15, 0
    %p119 = por %p117, %p118
    %p120 = scmp.ne.s32.totalorder %s112, %s114
    %p121 = scmp.eq.s32.totalorder %s20, 1
    %p122 = por %p120, %p121
    %p123 = scmp.ne.s32.totalorder %s114, %s115
    %p124 = scmp.eq.s32.totalorder %s20, 0
    %p125 = por %p123, %p124
    %p126 = scmp.ne.s32.totalorder %s114, %s115
    %p127 = scmp.eq.s32.totalorder %s21, 1
    %p128 = por %p126, %p127
    %p130 = scmp.ne.s32.totalorder %s115, %s129
    %p131 = scmp.eq.s32.totalorder %s21, 0
    %p132 = por %p130, %p131
    %s134 = sadd.s32 %s133, 1
    %p137 = scmp.eq.s32.totalorder %s15, 1
    %p138 = scmp.ne.s32.totalorder %s133, %s135
    %p139 = scmp.eq.s32.totalorder %s15, 0
    %p140 = por %p138, %p139
    %p141 = scmp.ne.s32.totalorder %s133, %s135
    %p142 = scmp.eq.s32.totalorder %s20, 1
    %p143 = por %p141, %p142
    %p144 = scmp.ne.s32.totalorder %s135, %s136
    %p145 = scmp.eq.s32.totalorder %s20, 0
    %p146 = por %p144, %p145
    %p147 = scmp.ne.s32.totalorder %s135, %s136
    %p148 = scmp.eq.s32.totalorder %s21, 1
    %p149 = por %p147, %p148
    %p151 = scmp.ne.s32.totalorder %s136, %s150
    %p152 = scmp.eq.s32.totalorder %s21, 0
    %p153 = por %p151, %p152
    %s155 = sadd.s32 %s154, 1
    %p158 = scmp.eq.s32.totalorder %s15, 1
    %p159 = scmp.ne.s32.totalorder %s154, %s156
    %p160 = scmp.eq.s32.totalorder %s15, 0
    %p161 = por %p159, %p160
    %p162 = scmp.ne.s32.totalorder %s154, %s156
    %p163 = scmp.eq.s32.totalorder %s20, 1
    %p164 = por %p162, %p163
    %p165 = scmp.ne.s32.totalorder %s156, %s157
    %p166 = scmp.eq.s32.totalorder %s20, 0
    %p167 = por %p165, %p166
    %p168 = scmp.ne.s32.totalorder %s156, %s157
    %p169 = scmp.eq.s32.totalorder %s21, 1
    %p170 = por %p168, %p169
    %p172 = scmp.ne.s32.totalorder %s157, %s171
    %p173 = scmp.eq.s32.totalorder %s21, 0
    %p174 = por %p172, %p173
    %s176 = sadd.s32 %s175, 1
    %p179 = scmp.eq.s32.totalorder %s15, 1
    %p180 = scmp.ne.s32.totalorder %s175, %s177
    %p181 = scmp.eq.s32.totalorder %s15, 0
    %p182 = por %p180, %p181
    %p183 = scmp.ne.s32.totalorder %s175, %s177
    %p184 = scmp.eq.s32.totalorder %s20, 1
    %p185 = por %p183, %p184
    %p186 = scmp.ne.s32.totalorder %s177, %s178
    %p187 = scmp.eq.s32.totalorder %s20, 0
    %p188 = por %p186, %p187
    %p189 = scmp.ne.s32.totalorder %s177, %s178
    %p190 = scmp.eq.s32.totalorder %s21, 1
    %p191 = por %p189, %p190
    %p193 = scmp.ne.s32.totalorder %s178, %s192
    %p194 = scmp.eq.s32.totalorder %s21, 0
    %p195 = por %p193, %p194
    %s197 = sadd.s32 %s196, 1
    %p200 = scmp.eq.s32.totalorder %s15, 1
    %p201 = scmp.ne.s32.totalorder %s196, %s198
    %p202 = scmp.eq.s32.totalorder %s15, 0
    %p203 = por %p201, %p202
    %p204 = scmp.ne.s32.totalorder %s196, %s198
    %p205 = scmp.eq.s32.totalorder %s20, 1
    %p206 = por %p204, %p205
    %p207 = scmp.ne.s32.totalorder %s198, %s199
    %p208 = scmp.eq.s32.totalorder %s20, 0
    %p209 = por %p207, %p208
    %p210 = scmp.ne.s32.totalorder %s198, %s199
    %p211 = scmp.eq.s32.totalorder %s21, 1
    %p212 = por %p210, %p211
    %p214 = scmp.ne.s32.totalorder %s199, %s213
    %p215 = scmp.eq.s32.totalorder %s21, 0
    %p216 = por %p214, %p215
    %s217 = ssub.s32 %s15, %s22
    %p218 = scmp.eq.s32.totalorder %s217, 0
    %s220 = sadd.s32 %s219, 1
    %s221 = scalar_select %p218, %s219, %s220
    %p224 = pneg %p218
    %p225 = scmp.eq.s32.totalorder %s15, 1
    %p226 = por %p224, %p225
    %p227 = scmp.ne.s32.totalorder %s219, %s222
    %p228 = scmp.eq.s32.totalorder %s15, 0
    %p229 = por %p227, %p228
    %p230 = scmp.ne.s32.totalorder %s219, %s222
    %p231 = scmp.eq.s32.totalorder %s20, 1
    %p232 = por %p230, %p231
    %p233 = scmp.ne.s32.totalorder %s222, %s223
    %p234 = scmp.eq.s32.totalorder %s20, 0
    %p235 = por %p233, %p234
    %p236 = scmp.ne.s32.totalorder %s222, %s223
    %p237 = scmp.eq.s32.totalorder %s21, 1
    %p238 = por %p236, %p237
    %p240 = scmp.ne.s32.totalorder %s223, %s239
    %p241 = scmp.eq.s32.totalorder %s21, 0
    %p242 = por %p240, %p241
    %p243 = scmp.le.s32.totalorder 1, %s15
    %p244 = scmp.lt.s32.totalorder %s15, 3
    %p245 = pnand %p243, %p244
    %p246 = pneg %p245
    // Predicated region
    $region9: #{rcab_forward.1} parent=5 // pred_check
      _
    $region10: #{rcab_forward.1} parent=5 // pred_check_branch
      %248 = sbr.rel (%p245) target = $region12
    $region11: #{rcab_forward.1} parent=5 // pred_region
      %s249 = ssub.s32 %s15, 1
      // Predicated region
      $region13: #{rcab_forward.1} parent=11 // pred_check
        %p250 = pneg %p62
      $region14: #{rcab_forward.1} parent=11 // pred_check_branch
        %252 = sbr.rel (%p250) target = $region16
      $region15: #{rcab_forward.1} parent=11 // pred_region
        _
      $region16: #{rcab_forward.1} parent=11 // pred_fallthru
        _
      // Predicated region
      $region17: #{rcab_forward.1} parent=11 // pred_check
        %p253 = pneg %p83
      $region18: #{rcab_forward.1} parent=11 // pred_check_branch
        %255 = sbr.rel (%p253) target = $region20
      $region19: #{rcab_forward.1} parent=11 // pred_region
        _
      $region20: #{rcab_forward.1} parent=11 // pred_fallthru
        _
      // Predicated region
      $region21: #{rcab_forward.1} parent=11 // pred_check
        %p256 = pneg %p104
      $region22: #{rcab_forward.1} parent=11 // pred_check_branch
        %258 = sbr.rel (%p256) target = $region24
      $region23: #{rcab_forward.1} parent=11 // pred_region
        _
      $region24: #{rcab_forward.1} parent=11 // pred_fallthru
        _
      // Predicated region
      $region25: #{rcab_forward.1} parent=11 // pred_check
        %p259 = pneg %p125
      $region26: #{rcab_forward.1} parent=11 // pred_check_branch
        %261 = sbr.rel (%p259) target = $region28
      $region27: #{rcab_forward.1} parent=11 // pred_region
        _
      $region28: #{rcab_forward.1} parent=11 // pred_fallthru
        _
      // Predicated region
      $region29: #{rcab_forward.1} parent=11 // pred_check
        %p262 = pneg %p146
      $region30: #{rcab_forward.1} parent=11 // pred_check_branch
        %264 = sbr.rel (%p262) target = $region32
      $region31: #{rcab_forward.1} parent=11 // pred_region
        _
      $region32: #{rcab_forward.1} parent=11 // pred_fallthru
        _
      // Predicated region
      $region33: #{rcab_forward.1} parent=11 // pred_check
        %p265 = pneg %p167
      $region34: #{rcab_forward.1} parent=11 // pred_check_branch
        %267 = sbr.rel (%p265) target = $region36
      $region35: #{rcab_forward.1} parent=11 // pred_region
        _
      $region36: #{rcab_forward.1} parent=11 // pred_fallthru
        _
      // Predicated region
      $region37: #{rcab_forward.1} parent=11 // pred_check
        %p268 = pneg %p188
      $region38: #{rcab_forward.1} parent=11 // pred_check_branch
        %270 = sbr.rel (%p268) target = $region40
      $region39: #{rcab_forward.1} parent=11 // pred_region
        _
      $region40: #{rcab_forward.1} parent=11 // pred_fallthru
        _
      // Predicated region
      $region41: #{rcab_forward.1} parent=11 // pred_check
        %p271 = pneg %p209
      $region42: #{rcab_forward.1} parent=11 // pred_check_branch
        %273 = sbr.rel (%p271) target = $region44
      $region43: #{rcab_forward.1} parent=11 // pred_region
        _
      $region44: #{rcab_forward.1} parent=11 // pred_fallthru
        _
    $region12: #{rcab_forward.1} parent=5 // pred_fallthru
      _
    %p274 = scmp.lt.s32.totalorder %s15, 2
    // Predicated region
    $region45: #{rcab_forward.1} parent=5 // pred_check
      %p275 = pneg %p274
    $region46: #{rcab_forward.1} parent=5 // pred_check_branch
      %277 = sbr.rel (%p275) target = $region48
    $region47: #{rcab_forward.1} parent=5 // pred_region
      // Predicated region
      $region49: #{rcab_forward.1} parent=47 // pred_check
        %p278 = pneg %p35
      $region50: #{rcab_forward.1} parent=47 // pred_check_branch
        %280 = sbr.rel (%p278) target = $region52
      $region51: #{rcab_forward.1} parent=47 // pred_region
        %s281 = smul.u32 4, %s15
        %p282 = scmp.lt.s32.totalorder %s281, 7
        %s283 = scalar_select %p282, %s281, 7
        %s284 = smul.addr %s283, 4
        %s285 = smul.addr %s284, 8
        %s286 = scalar_lea.vmem %s0, %s285
        %s287 = smul.u32 4, %s15
      $region52: #{rcab_forward.1} parent=47 // pred_fallthru
        _
    $region48: #{rcab_forward.1} parent=5 // pred_fallthru
      _
    %p288 = scmp.le.s32.totalorder 1, %s15
    %p289 = scmp.lt.s32.totalorder %s15, 3
    %p290 = pnand %p288, %p289
    %p291 = pneg %p290
    // Predicated region
    $region53: #{rcab_forward.1} parent=5 // pred_check
      _
    $region54: #{rcab_forward.1} parent=5 // pred_check_branch
      %293 = sbr.rel (%p290) target = $region56
    $region55: #{rcab_forward.1} parent=5 // pred_region
      %s294 = ssub.s32 %s15, 1
      %s295 = smul.u32 4, %s20
      %p296 = scmp.lt.s32.totalorder %s295, 7
      %s297 = scalar_select %p296, %s295, 7
      %s298 = smul.addr %s297, 4
      %s299 = smul.addr %s298, 8
      %s300 = scalar_lea.vmem %s0, %s299
      %p301 = pneg %p41
      %p302 = pneg %p38
      %p303 = pneg %p62
      %p304 = pneg %p59
      %p305 = pneg %p83
      %p306 = pneg %p80
      %p307 = pneg %p104
      %p308 = pneg %p101
      %p309 = pneg %p125
      %p310 = pneg %p122
      %p311 = pneg %p146
      %p312 = pneg %p143
      %p313 = pneg %p167
      %p314 = pneg %p164
      %p315 = pneg %p188
      %p316 = pneg %p185
      %p317 = pneg %p209
      %p318 = pneg %p206
      %p319 = pneg %p235
      %p320 = pneg %p232
      %s321 = smul.u32 4, %s20
      %p322 = scmp.lt.s32.totalorder %s321, 7
      %s323 = scalar_select %p322, %s321, 7
      %s324 = smul.addr %s323, 4
      %s325 = smul.addr %s324, 8
      %s326 = scalar_lea.vmem %s9, %s325
      %s327 = smul.u32 4, %s20
      %p328 = scmp.lt.s32.totalorder %s327, 7
      %s329 = scalar_select %p328, %s327, 7
      %s330 = smul.addr %s329, 4
      %s331 = smul.addr %s330, 8
      %s332 = scalar_lea.vmem %s0, %s331
      %s333 = smul.u32 4, %s20
      %s334 = smul.u32 4, %s20
      %p335 = scmp.lt.s32.totalorder %s334, 7
      %s336 = scalar_select %p335, %s334, 7
      %s337 = smul.addr %s336, 4
      %s338 = smul.addr %s337, 8
      %s339 = scalar_lea.vmem %s9, %s338
      %s340 = smul.u32 4, %s20
      %v342 = vld [vmem:[%s332] sm:$0xff]
      %v343 = vld [vmem:[%s332 + $0x8] sm:$0xff]
      %v344 = vld [vmem:[%s332 + $0x10] sm:$0xff]
      %v345 = vld [vmem:[%s332 + $0x18] sm:$0xff]
      %v346 = vld [vmem:[%s332 + $0x20] sm:$0xff]
      %v347 = vld [vmem:[%s332 + $0x28] sm:$0xff]
      %v348 = vld [vmem:[%s332 + $0x30] sm:$0xff]
      %v349 = vld [vmem:[%s332 + $0x38] sm:$0xff]
      %v350 = vld [vmem:[%s332 + $0x40] sm:$0xff]
      %v351 = vld [vmem:[%s332 + $0x48] sm:$0xff]
      %v352 = vld [vmem:[%s332 + $0x50] sm:$0xff]
      %v353 = vld [vmem:[%s332 + $0x58] sm:$0xff]
      %v354 = vld [vmem:[%s332 + $0x60] sm:$0xff]
      %v355 = vld [vmem:[%s332 + $0x68] sm:$0xff]
      %v356 = vld [vmem:[%s332 + $0x70] sm:$0xff]
      %v357 = vld [vmem:[%s332 + $0x78] sm:$0xff]
      %v358 = vpack.c.bf16 %v344, %v342
      %v359 = vpack.c.bf16 %v345, %v343
      %v360 = vpack.c.bf16 %v348, %v346
      %v361 = vpack.c.bf16 %v349, %v347
      %v362 = vpack.c.bf16 %v352, %v350
      %v363 = vpack.c.bf16 %v353, %v351
      %v364 = vpack.c.bf16 %v356, %v354
      %v365 = vpack.c.bf16 %v357, %v355
      %v367 = vshrl.u32 %v358, 16
      %v369 = vrot.slane %v367, 7
      %v370 = vshll.u32 %v358, 16
      %v372 = vor.u32 %v369, %v370
      %v374 = vshrl.u32 %v359, 16
      %v376 = vrot.slane %v374, 7
      %v377 = vshll.u32 %v359, 16
      %v379 = vor.u32 %v376, %v377
      %v381 = vshrl.u32 %v360, 16
      %v383 = vrot.slane %v381, 7
      %v384 = vshll.u32 %v360, 16
      %v386 = vor.u32 %v383, %v384
      %v388 = vshrl.u32 %v361, 16
      %v390 = vrot.slane %v388, 7
      %v391 = vshll.u32 %v361, 16
      %v393 = vor.u32 %v390, %v391
      %v395 = vshrl.u32 %v362, 16
      %v397 = vrot.slane %v395, 7
      %v398 = vshll.u32 %v362, 16
      %v400 = vor.u32 %v397, %v398
      %v402 = vshrl.u32 %v363, 16
      %v404 = vrot.slane %v402, 7
      %v405 = vshll.u32 %v363, 16
      %v407 = vor.u32 %v404, %v405
      %v409 = vshrl.u32 %v364, 16
      %v411 = vrot.slane %v409, 7
      %v412 = vshll.u32 %v364, 16
      %v414 = vor.u32 %v411, %v412
      %v416 = vshrl.u32 %v365, 16
      %v418 = vrot.slane %v416, 7
      %v419 = vshll.u32 %v365, 16
      %v421 = vor.u32 %v418, %v419
      %vm430 = vcmask 1040384
      %vm431 = vsmask.f32 256
      %vm432 = vmand %vm430, %vm431
      %v433 = vsel %vm432, 0, %v372
      %v434 = vsel %vm432, 0, %v379
      %v435 = vsel %vm432, 0, %v386
      %v436 = vsel %vm432, 0, %v393
      %v437 = vsel %vm432, 0, %v400
      %v438 = vsel %vm432, 0, %v407
      %v439 = vsel %vm432, 0, %v414
      %v440 = vsel %vm432, 0, %v421
      %v441 = vrot.slane %v370, 1
      %v442 = vor.u32 %v367, %v441
      %v443 = vrot.slane %v377, 1
      %v444 = vor.u32 %v374, %v443
      %v445 = vrot.slane %v384, 1
      %v446 = vor.u32 %v381, %v445
      %v447 = vrot.slane %v391, 1
      %v448 = vor.u32 %v388, %v447
      %v449 = vrot.slane %v398, 1
      %v450 = vor.u32 %v395, %v449
      %v451 = vrot.slane %v405, 1
      %v452 = vor.u32 %v402, %v451
      %v453 = vrot.slane %v412, 1
      %v454 = vor.u32 %v409, %v453
      %v455 = vrot.slane %v419, 1
      %v456 = vor.u32 %v416, %v455
      %vm465 = vcmask 1047552
      %vm466 = vsmask.f32 7424
      %vm467 = vmand %vm465, %vm466
      %v468 = vsel %vm467, %v442, 0
      %v469 = vsel %vm467, %v444, 0
      %v470 = vsel %vm467, %v446, 0
      %v471 = vsel %vm467, %v448, 0
      %v472 = vsel %vm467, %v450, 0
      %v473 = vsel %vm467, %v452, 0
      %v474 = vsel %vm467, %v454, 0
      %v475 = vsel %vm467, %v456, 0
      %v476 = vld [vmem:[%s1] sm:$0xff]
      %v477 = vld [vmem:[%s1 + $0x8] sm:$0xff]
      %v478 = vld [vmem:[%s1 + $0x10] sm:$0xff]
      %v479 = vld [vmem:[%s1 + $0x18] sm:$0xff]
      %v480 = vld [vmem:[%s1 + $0x20] sm:$0xff]
      %v481 = vld [vmem:[%s1 + $0x28] sm:$0xff]
      %v482 = vld [vmem:[%s1 + $0x30] sm:$0xff]
      %v483 = vld [vmem:[%s1 + $0x38] sm:$0xff]
      %v484 = vld [vmem:[%s1 + $0x40] sm:$0xff]
      %v485 = vld [vmem:[%s1 + $0x48] sm:$0xff]
      %v486 = vld [vmem:[%s1 + $0x50] sm:$0xff]
      %v487 = vld [vmem:[%s1 + $0x58] sm:$0xff]
      %v488 = vld [vmem:[%s1 + $0x60] sm:$0xff]
      %v489 = vld [vmem:[%s1 + $0x68] sm:$0xff]
      %v490 = vld [vmem:[%s1 + $0x70] sm:$0xff]
      %v491 = vld [vmem:[%s1 + $0x78] sm:$0xff]
      %v492 = vld [vmem:[%s1 + $0x80] sm:$0xff]
      %v493 = vld [vmem:[%s1 + $0x88] sm:$0xff]
      %v494 = vld [vmem:[%s1 + $0x90] sm:$0xff]
      %v495 = vld [vmem:[%s1 + $0x98] sm:$0xff]
      %v496 = vld [vmem:[%s1 + $0xa0] sm:$0xff]
      %v497 = vld [vmem:[%s1 + $0xa8] sm:$0xff]
      %v498 = vld [vmem:[%s1 + $0xb0] sm:$0xff]
      %v499 = vld [vmem:[%s1 + $0xb8] sm:$0xff]
      %v500 = vld [vmem:[%s1 + $0xc0] sm:$0xff]
      %v501 = vld [vmem:[%s1 + $0xc8] sm:$0xff]
      %v502 = vld [vmem:[%s1 + $0xd0] sm:$0xff]
      %v503 = vld [vmem:[%s1 + $0xd8] sm:$0xff]
      %v504 = vld [vmem:[%s1 + $0xe0] sm:$0xff]
      %v505 = vld [vmem:[%s1 + $0xe8] sm:$0xff]
      %v506 = vld [vmem:[%s1 + $0xf0] sm:$0xff]
      %v507 = vld [vmem:[%s1 + $0xf8] sm:$0xff]
      %s508 = scalar_lea.vmem %s1, 256
      %v509 = vld [vmem:[%s508] sm:$0xff]
      %v510 = vld [vmem:[%s508 + $0x8] sm:$0xff]
      %v511 = vld [vmem:[%s508 + $0x10] sm:$0xff]
      %v512 = vld [vmem:[%s508 + $0x18] sm:$0xff]
      %v513 = vld [vmem:[%s508 + $0x20] sm:$0xff]
      %v514 = vld [vmem:[%s508 + $0x28] sm:$0xff]
      %v515 = vld [vmem:[%s508 + $0x30] sm:$0xff]
      %v516 = vld [vmem:[%s508 + $0x38] sm:$0xff]
      %v517 = vld [vmem:[%s508 + $0x40] sm:$0xff]
      %v518 = vld [vmem:[%s508 + $0x48] sm:$0xff]
      %v519 = vld [vmem:[%s508 + $0x50] sm:$0xff]
      %v520 = vld [vmem:[%s508 + $0x58] sm:$0xff]
      %v521 = vld [vmem:[%s508 + $0x60] sm:$0xff]
      %v522 = vld [vmem:[%s508 + $0x68] sm:$0xff]
      %v523 = vld [vmem:[%s508 + $0x70] sm:$0xff]
      %v524 = vld [vmem:[%s508 + $0x78] sm:$0xff]
      %v525 = vld [vmem:[%s508 + $0x80] sm:$0xff]
      %v526 = vld [vmem:[%s508 + $0x88] sm:$0xff]
      %v527 = vld [vmem:[%s508 + $0x90] sm:$0xff]
      %v528 = vld [vmem:[%s508 + $0x98] sm:$0xff]
      %v529 = vld [vmem:[%s508 + $0xa0] sm:$0xff]
      %v530 = vld [vmem:[%s508 + $0xa8] sm:$0xff]
      %v531 = vld [vmem:[%s508 + $0xb0] sm:$0xff]
      %v532 = vld [vmem:[%s508 + $0xb8] sm:$0xff]
      %v533 = vld [vmem:[%s508 + $0xc0] sm:$0xff]
      %v534 = vld [vmem:[%s508 + $0xc8] sm:$0xff]
      %v535 = vld [vmem:[%s508 + $0xd0] sm:$0xff]
      %v536 = vld [vmem:[%s508 + $0xd8] sm:$0xff]
      %v537 = vld [vmem:[%s508 + $0xe0] sm:$0xff]
      %v538 = vld [vmem:[%s508 + $0xe8] sm:$0xff]
      %v539 = vld [vmem:[%s508 + $0xf0] sm:$0xff]
      %v540 = vld [vmem:[%s508 + $0xf8] sm:$0xff]
      %v573 = vunpack.c.l.b16 %v509
      %v574 = vunpack.c.h.b16 %v509
      %v575 = vunpack.c.l.b16 %v510
      %v576 = vunpack.c.h.b16 %v510
      %v577 = vunpack.c.l.b16 %v511
      %v578 = vunpack.c.h.b16 %v511
      %v579 = vunpack.c.l.b16 %v512
      %v580 = vunpack.c.h.b16 %v512
      %v581 = vunpack.c.l.b16 %v513
      %v582 = vunpack.c.h.b16 %v513
      %v583 = vunpack.c.l.b16 %v514
      %v584 = vunpack.c.h.b16 %v514
      %v585 = vunpack.c.l.b16 %v515
      %v586 = vunpack.c.h.b16 %v515
      %v587 = vunpack.c.l.b16 %v516
      %v588 = vunpack.c.h.b16 %v516
      %v589 = vunpack.c.l.b16 %v517
      %v590 = vunpack.c.h.b16 %v517
      %v591 = vunpack.c.l.b16 %v518
      %v592 = vunpack.c.h.b16 %v518
      %v593 = vunpack.c.l.b16 %v519
      %v594 = vunpack.c.h.b16 %v519
      %v595 = vunpack.c.l.b16 %v520
      %v596 = vunpack.c.h.b16 %v520
      %v597 = vunpack.c.l.b16 %v521
      %v598 = vunpack.c.h.b16 %v521
      %v599 = vunpack.c.l.b16 %v522
      %v600 = vunpack.c.h.b16 %v522
      %v601 = vunpack.c.l.b16 %v523
      %v602 = vunpack.c.h.b16 %v523
      %v603 = vunpack.c.l.b16 %v524
      %v604 = vunpack.c.h.b16 %v524
      %v605 = vunpack.c.l.b16 %v525
      %v606 = vunpack.c.h.b16 %v525
      %v607 = vunpack.c.l.b16 %v526
      %v608 = vunpack.c.h.b16 %v526
      %v609 = vunpack.c.l.b16 %v527
      %v610 = vunpack.c.h.b16 %v527
      %v611 = vunpack.c.l.b16 %v528
      %v612 = vunpack.c.h.b16 %v528
      %v613 = vunpack.c.l.b16 %v529
      %v614 = vunpack.c.h.b16 %v529
      %v615 = vunpack.c.l.b16 %v530
      %v616 = vunpack.c.h.b16 %v530
      %v617 = vunpack.c.l.b16 %v531
      %v618 = vunpack.c.h.b16 %v531
      %v619 = vunpack.c.l.b16 %v532
      %v620 = vunpack.c.h.b16 %v532
      %v621 = vunpack.c.l.b16 %v533
      %v622 = vunpack.c.h.b16 %v533
      %v623 = vunpack.c.l.b16 %v534
      %v624 = vunpack.c.h.b16 %v534
      %v625 = vunpack.c.l.b16 %v535
      %v626 = vunpack.c.h.b16 %v535
      %v627 = vunpack.c.l.b16 %v536
      %v628 = vunpack.c.h.b16 %v536
      %v629 = vunpack.c.l.b16 %v537
      %v630 = vunpack.c.h.b16 %v537
      %v631 = vunpack.c.l.b16 %v538
      %v632 = vunpack.c.h.b16 %v538
      %v633 = vunpack.c.l.b16 %v539
      %v634 = vunpack.c.h.b16 %v539
      %v635 = vunpack.c.l.b16 %v540
      %v636 = vunpack.c.h.b16 %v540
      %v637 = vpack.c.b16 %v575, %v573
      %v638 = vpack.c.b16 %v576, %v574
      %v639 = vpack.c.b16 %v579, %v577
      %v640 = vpack.c.b16 %v580, %v578
      %v641 = vpack.c.b16 %v583, %v581
      %v642 = vpack.c.b16 %v584, %v582
      %v643 = vpack.c.b16 %v587, %v585
      %v644 = vpack.c.b16 %v588, %v586
      %v645 = vpack.c.b16 %v591, %v589
      %v646 = vpack.c.b16 %v592, %v590
      %v647 = vpack.c.b16 %v595, %v593
      %v648 = vpack.c.b16 %v596, %v594
      %v649 = vpack.c.b16 %v599, %v597
      %v650 = vpack.c.b16 %v600, %v598
      %v651 = vpack.c.b16 %v603, %v601
      %v652 = vpack.c.b16 %v604, %v602
      %v653 = vpack.c.b16 %v607, %v605
      %v654 = vpack.c.b16 %v608, %v606
      %v655 = vpack.c.b16 %v611, %v609
      %v656 = vpack.c.b16 %v612, %v610
      %v657 = vpack.c.b16 %v615, %v613
      %v658 = vpack.c.b16 %v616, %v614
      %v659 = vpack.c.b16 %v619, %v617
      %v660 = vpack.c.b16 %v620, %v618
      %v661 = vpack.c.b16 %v623, %v621
      %v662 = vpack.c.b16 %v624, %v622
      %v663 = vpack.c.b16 %v627, %v625
      %v664 = vpack.c.b16 %v628, %v626
      %v665 = vpack.c.b16 %v631, %v629
      %v666 = vpack.c.b16 %v632, %v630
      %v667 = vpack.c.b16 %v635, %v633
      %v668 = vpack.c.b16 %v636, %v634
      %701 = vmatprep.subr.bf16.mxu0 %v638
      %702 = vmatpush1.bf16.msra.mxu0 %v637
      %703 = vmatprep.subr.bf16.mxu0 %v640
      %704 = vmatpush1.bf16.msra.mxu0 %v639
      %705 = vmatprep.subr.bf16.mxu0 %v642
      %706 = vmatpush1.bf16.msra.mxu0 %v641
      %707 = vmatprep.subr.bf16.mxu0 %v644
      %708 = vmatpush1.bf16.msra.mxu0 %v643
      %709 = vmatprep.subr.bf16.mxu0 %v646
      %710 = vmatpush1.bf16.msra.mxu0 %v645
      %711 = vmatprep.subr.bf16.mxu0 %v648
      %712 = vmatpush1.bf16.msra.mxu0 %v647
      %713 = vmatprep.subr.bf16.mxu0 %v650
      %714 = vmatpush1.bf16.msra.mxu0 %v649
      %715 = vmatprep.subr.bf16.mxu0 %v652
      %716 = vmatpush1.bf16.msra.mxu0 %v651
      %717 = vmatprep.subr.bf16.mxu0 %v654
      %718 = vmatpush1.bf16.msra.mxu0 %v653
      %719 = vmatprep.subr.bf16.mxu0 %v656
      %720 = vmatpush1.bf16.msra.mxu0 %v655
      %721 = vmatprep.subr.bf16.mxu0 %v658
      %722 = vmatpush1.bf16.msra.mxu0 %v657
      %723 = vmatprep.subr.bf16.mxu0 %v660
      %724 = vmatpush1.bf16.msra.mxu0 %v659
      %725 = vmatprep.subr.bf16.mxu0 %v662
      %726 = vmatpush1.bf16.msra.mxu0 %v661
      %727 = vmatprep.subr.bf16.mxu0 %v664
      %728 = vmatpush1.bf16.msra.mxu0 %v663
      %729 = vmatprep.subr.bf16.mxu0 %v666
      %730 = vmatpush1.bf16.msra.mxu0 %v665
      %731 = vmatprep.subr.bf16.mxu0 %v668
      %732 = vmatpush1.bf16.msra.mxu0 %v667
      %733 = vmatprep.mubr.bf16.mxu0 %v359
      %734 = vmatmul.mubr.bf16.gmra.mrb[0].mxu0 %v358
      %v735 = vpop.f32.mrb[0].mxu0
      %v736 = vadd.f32 0.0, %v735
      %v737 = vpop.f32.mrb[0].mxu0
      %v738 = vadd.f32 0.0, %v737
      %v739 = vpop.f32.mrb[0].mxu0
      %v740 = vadd.f32 0.0, %v739
      %v741 = vpop.f32.mrb[0].mxu0
      %v742 = vadd.f32 0.0, %v741
      %743 = vmatprep.mubr.bf16.mxu0 %v361
      %744 = vmatmul.mubr.bf16.gmra.mrb[0].mxu0 %v360
      %v745 = vpop.f32.mrb[0].mxu0
      %v746 = vadd.f32 0.0, %v745
      %v747 = vpop.f32.mrb[0].mxu0
      %v748 = vadd.f32 0.0, %v747
      %v749 = vpop.f32.mrb[0].mxu0
      %v750 = vadd.f32 0.0, %v749
      %v751 = vpop.f32.mrb[0].mxu0
      %v752 = vadd.f32 0.0, %v751
      %753 = vmatprep.mubr.bf16.mxu0 %v363
      %754 = vmatmul.mubr.bf16.gmra.mrb[0].mxu0 %v362
      %v755 = vpop.f32.mrb[0].mxu0
      %v756 = vadd.f32 0.0, %v755
      %v757 = vpop.f32.mrb[0].mxu0
      %v758 = vadd.f32 0.0, %v757
      %v759 = vpop.f32.mrb[0].mxu0
      %v760 = vadd.f32 0.0, %v759
      %v761 = vpop.f32.mrb[0].mxu0
      %v762 = vadd.f32 0.0, %v761
      %763 = vmatprep.mubr.bf16.mxu0 %v365
      %764 = vmatmul.mubr.bf16.gmra.mrb[0].mxu0 %v364
      %v765 = vpop.f32.mrb[0].mxu0
      %v766 = vadd.f32 0.0, %v765
      %v767 = vpop.f32.mrb[0].mxu0
      %v768 = vadd.f32 0.0, %v767
      %v769 = vpop.f32.mrb[0].mxu0
      %v770 = vadd.f32 0.0, %v769
      %v771 = vpop.f32.mrb[0].mxu0
      %v772 = vadd.f32 0.0, %v771
      %773 = vdwg.mxu0
      %v806 = vunpack.c.l.b16 %v476
      %v807 = vunpack.c.h.b16 %v476
      %v808 = vunpack.c.l.b16 %v477
      %v809 = vunpack.c.h.b16 %v477
      %v810 = vunpack.c.l.b16 %v478
      %v811 = vunpack.c.h.b16 %v478
      %v812 = vunpack.c.l.b16 %v479
      %v813 = vunpack.c.h.b16 %v479
      %v814 = vunpack.c.l.b16 %v480
      %v815 = vunpack.c.h.b16 %v480
      %v816 = vunpack.c.l.b16 %v481
      %v817 = vunpack.c.h.b16 %v481
      %v818 = vunpack.c.l.b16 %v482
      %v819 = vunpack.c.h.b16 %v482
      %v820 = vunpack.c.l.b16 %v483
      %v821 = vunpack.c.h.b16 %v483
      %v822 = vunpack.c.l.b16 %v484
      %v823 = vunpack.c.h.b16 %v484
      %v824 = vunpack.c.l.b16 %v485
      %v825 = vunpack.c.h.b16 %v485
      %v826 = vunpack.c.l.b16 %v486
      %v827 = vunpack.c.h.b16 %v486
      %v828 = vunpack.c.l.b16 %v487
      %v829 = vunpack.c.h.b16 %v487
      %v830 = vunpack.c.l.b16 %v488
      %v831 = vunpack.c.h.b16 %v488
      %v832 = vunpack.c.l.b16 %v489
      %v833 = vunpack.c.h.b16 %v489
      %v834 = vunpack.c.l.b16 %v490
      %v835 = vunpack.c.h.b16 %v490
      %v836 = vunpack.c.l.b16 %v491
      %v837 = vunpack.c.h.b16 %v491
      %v838 = vunpack.c.l.b16 %v492
      %v839 = vunpack.c.h.b16 %v492
      %v840 = vunpack.c.l.b16 %v493
      %v841 = vunpack.c.h.b16 %v493
      %v842 = vunpack.c.l.b16 %v494
      %v843 = vunpack.c.h.b16 %v494
      %v844 = vunpack.c.l.b16 %v495
      %v845 = vunpack.c.h.b16 %v495
      %v846 = vunpack.c.l.b16 %v496
      %v847 = vunpack.c.h.b16 %v496
      %v848 = vunpack.c.l.b16 %v497
      %v849 = vunpack.c.h.b16 %v497
      %v850 = vunpack.c.l.b16 %v498
      %v851 = vunpack.c.h.b16 %v498
      %v852 = vunpack.c.l.b16 %v499
      %v853 = vunpack.c.h.b16 %v499
      %v854 = vunpack.c.l.b16 %v500
      %v855 = vunpack.c.h.b16 %v500
      %v856 = vunpack.c.l.b16 %v501
      %v857 = vunpack.c.h.b16 %v501
      %v858 = vunpack.c.l.b16 %v502
      %v859 = vunpack.c.h.b16 %v502
      %v860 = vunpack.c.l.b16 %v503
      %v861 = vunpack.c.h.b16 %v503
      %v862 = vunpack.c.l.b16 %v504
      %v863 = vunpack.c.h.b16 %v504
      %v864 = vunpack.c.l.b16 %v505
      %v865 = vunpack.c.h.b16 %v505
      %v866 = vunpack.c.l.b16 %v506
      %v867 = vunpack.c.h.b16 %v506
      %v868 = vunpack.c.l.b16 %v507
      %v869 = vunpack.c.h.b16 %v507
      %v870 = vpack.c.b16 %v808, %v806
      %v871 = vpack.c.b16 %v809, %v807
      %v872 = vpack.c.b16 %v812, %v810
      %v873 = vpack.c.b16 %v813, %v811
      %v874 = vpack.c.b16 %v816, %v814
      %v875 = vpack.c.b16 %v817, %v815
      %v876 = vpack.c.b16 %v820, %v818
      %v877 = vpack.c.b16 %v821, %v819
      %v878 = vpack.c.b16 %v824, %v822
      %v879 = vpack.c.b16 %v825, %v823
      %v880 = vpack.c.b16 %v828, %v826
      %v881 = vpack.c.b16 %v829, %v827
      %v882 = vpack.c.b16 %v832, %v830
      %v883 = vpack.c.b16 %v833, %v831
      %v884 = vpack.c.b16 %v836, %v834
      %v885 = vpack.c.b16 %v837, %v835
      %v886 = vpack.c.b16 %v840, %v838
      %v887 = vpack.c.b16 %v841, %v839
      %v888 = vpack.c.b16 %v844, %v842
      %v889 = vpack.c.b16 %v845, %v843
      %v890 = vpack.c.b16 %v848, %v846
      %v891 = vpack.c.b16 %v849, %v847
      %v892 = vpack.c.b16 %v852, %v850
      %v893 = vpack.c.b16 %v853, %v851
      %v894 = vpack.c.b16 %v856, %v854
      %v895 = vpack.c.b16 %v857, %v855
      %v896 = vpack.c.b16 %v860, %v858
      %v897 = vpack.c.b16 %v861, %v859
      %v898 = vpack.c.b16 %v864, %v862
      %v899 = vpack.c.b16 %v865, %v863
      %v900 = vpack.c.b16 %v868, %v866
      %v901 = vpack.c.b16 %v869, %v867
      %934 = vmatprep.subr.bf16.mxu0 %v871
      %935 = vmatpush1.bf16.msra.mxu0 %v870
      %936 = vmatprep.subr.bf16.mxu0 %v873
      %937 = vmatpush1.bf16.msra.mxu0 %v872
      %938 = vmatprep.subr.bf16.mxu0 %v875
      %939 = vmatpush1.bf16.msra.mxu0 %v874
      %940 = vmatprep.subr.bf16.mxu0 %v877
      %941 = vmatpush1.bf16.msra.mxu0 %v876
      %942 = vmatprep.subr.bf16.mxu0 %v879
      %943 = vmatpush1.bf16.msra.mxu0 %v878
      %944 = vmatprep.subr.bf16.mxu0 %v881
      %945 = vmatpush1.bf16.msra.mxu0 %v880
      %946 = vmatprep.subr.bf16.mxu0 %v883
      %947 = vmatpush1.bf16.msra.mxu0 %v882
      %948 = vmatprep.subr.bf16.mxu0 %v885
      %949 = vmatpush1.bf16.msra.mxu0 %v884
      %950 = vmatprep.subr.bf16.mxu0 %v887
      %951 = vmatpush1.bf16.msra.mxu0 %v886
      %952 = vmatprep.subr.bf16.mxu0 %v889
      %953 = vmatpush1.bf16.msra.mxu0 %v888
      %954 = vmatprep.subr.bf16.mxu0 %v891
      %955 = vmatpush1.bf16.msra.mxu0 %v890
      %956 = vmatprep.subr.bf16.mxu0 %v893
      %957 = vmatpush1.bf16.msra.mxu0 %v892
      %958 = vmatprep.subr.bf16.mxu0 %v895
      %959 = vmatpush1.bf16.msra.mxu0 %v894
      %960 = vmatprep.subr.bf16.mxu0 %v897
      %961 = vmatpush1.bf16.msra.mxu0 %v896
      %962 = vmatprep.subr.bf16.mxu0 %v899
      %963 = vmatpush1.bf16.msra.mxu0 %v898
      %964 = vmatprep.subr.bf16.mxu0 %v901
      %965 = vmatpush1.bf16.msra.mxu0 %v900
      %966 = vmatprep.mubr.bf16.mxu0 %v434
      %967 = vmatmul.mubr.bf16.gmra.mrb[0].mxu0 %v433
      %v968 = vpop.f32.mrb[0].mxu0
      %v969 = vadd.f32 %v736, %v968
      %v970 = vpop.f32.mrb[0].mxu0
      %v971 = vadd.f32 %v738, %v970
      %v972 = vpop.f32.mrb[0].mxu0
      %v973 = vadd.f32 %v740, %v972
      %v974 = vpop.f32.mrb[0].mxu0
      %v975 = vadd.f32 %v742, %v974
      %976 = vmatprep.mubr.bf16.mxu0 %v436
      %977 = vmatmul.mubr.bf16.gmra.mrb[0].mxu0 %v435
      %v978 = vpop.f32.mrb[0].mxu0
      %v979 = vadd.f32 %v746, %v978
      %v980 = vpop.f32.mrb[0].mxu0
      %v981 = vadd.f32 %v748, %v980
      %v982 = vpop.f32.mrb[0].mxu0
      %v983 = vadd.f32 %v750, %v982
      %v984 = vpop.f32.mrb[0].mxu0
      %v985 = vadd.f32 %v752, %v984
      %986 = vmatprep.mubr.bf16.mxu0 %v438
      %987 = vmatmul.mubr.bf16.gmra.mrb[0].mxu0 %v437
      %v988 = vpop.f32.mrb[0].mxu0
      %v989 = vadd.f32 %v756, %v988
      %v990 = vpop.f32.mrb[0].mxu0
      %v991 = vadd.f32 %v758, %v990
      %v992 = vpop.f32.mrb[0].mxu0
      %v993 = vadd.f32 %v760, %v992
      %v994 = vpop.f32.mrb[0].mxu0
      %v995 = vadd.f32 %v762, %v994
      %996 = vmatprep.mubr.bf16.mxu0 %v440
      %997 = vmatmul.mubr.bf16.gmra.mrb[0].mxu0 %v439
      %v998 = vpop.f32.mrb[0].mxu0
      %v999 = vadd.f32 %v766, %v998
      %v1000 = vpop.f32.mrb[0].mxu0
      %v1001 = vadd.f32 %v768, %v1000
      %v1002 = vpop.f32.mrb[0].mxu0
      %v1003 = vadd.f32 %v770, %v1002
      %v1004 = vpop.f32.mrb[0].mxu0
      %v1005 = vadd.f32 %v772, %v1004
      %1006 = vdwg.mxu0
      %s1007 = scalar_lea.vmem %s1, 512
      %v1008 = vld [vmem:[%s1007] sm:$0xff]
      %v1009 = vld [vmem:[%s1007 + $0x8] sm:$0xff]
      %v1010 = vld [vmem:[%s1007 + $0x10] sm:$0xff]
      %v1011 = vld [vmem:[%s1007 + $0x18] sm:$0xff]
      %v1012 = vld [vmem:[%s1007 + $0x20] sm:$0xff]
      %v1013 = vld [vmem:[%s1007 + $0x28] sm:$0xff]
      %v1014 = vld [vmem:[%s1007 + $0x30] sm:$0xff]
      %v1015 = vld [vmem:[%s1007 + $0x38] sm:$0xff]
      %v1016 = vld [vmem:[%s1007 + $0x40] sm:$0xff]
      %v1017 = vld [vmem:[%s1007 + $0x48] sm:$0xff]
      %v1018 = vld [vmem:[%s1007 + $0x50] sm:$0xff]
      %v1019 = vld [vmem:[%s1007 + $0x58] sm:$0xff]
      %v1020 = vld [vmem:[%s1007 + $0x60] sm:$0xff]
      %v1021 = vld [vmem:[%s1007 + $0x68] sm:$0xff]
      %v1022 = vld [vmem:[%s1007 + $0x70] sm:$0xff]
      %v1023 = vld [vmem:[%s1007 + $0x78] sm:$0xff]
      %v1024 = vld [vmem:[%s1007 + $0x80] sm:$0xff]
      %v1025 = vld [vmem:[%s1007 + $0x88] sm:$0xff]
      %v1026 = vld [vmem:[%s1007 + $0x90] sm:$0xff]
      %v1027 = vld [vmem:[%s1007 + $0x98] sm:$0xff]
      %v1028 = vld [vmem:[%s1007 + $0xa0] sm:$0xff]
      %v1029 = vld [vmem:[%s1007 + $0xa8] sm:$0xff]
      %v1030 = vld [vmem:[%s1007 + $0xb0] sm:$0xff]
      %v1031 = vld [vmem:[%s1007 + $0xb8] sm:$0xff]
      %v1032 = vld [vmem:[%s1007 + $0xc0] sm:$0xff]
      %v1033 = vld [vmem:[%s1007 + $0xc8] sm:$0xff]
      %v1034 = vld [vmem:[%s1007 + $0xd0] sm:$0xff]
      %v1035 = vld [vmem:[%s1007 + $0xd8] sm:$0xff]
      %v1036 = vld [vmem:[%s1007 + $0xe0] sm:$0xff]
      %v1037 = vld [vmem:[%s1007 + $0xe8] sm:$0xff]
      %v1038 = vld [vmem:[%s1007 + $0xf0] sm:$0xff]
      %v1039 = vld [vmem:[%s1007 + $0xf8] sm:$0xff]
      %v1072 = vunpack.c.l.b16 %v1008
      %v1073 = vunpack.c.h.b16 %v1008
      %v1074 = vunpack.c.l.b16 %v1009
      %v1075 = vunpack.c.h.b16 %v1009
      %v1076 = vunpack.c.l.b16 %v1010
      %v1077 = vunpack.c.h.b16 %v1010
      %v1078 = vunpack.c.l.b16 %v1011
      %v1079 = vunpack.c.h.b16 %v1011
      %v1080 = vunpack.c.l.b16 %v1012
      %v1081 = vunpack.c.h.b16 %v1012
      %v1082 = vunpack.c.l.b16 %v1013
      %v1083 = vunpack.c.h.b16 %v1013
      %v1084 = vunpack.c.l.b16 %v1014
      %v1085 = vunpack.c.h.b16 %v1014
      %v1086 = vunpack.c.l.b16 %v1015
      %v1087 = vunpack.c.h.b16 %v1015
      %v1088 = vunpack.c.l.b16 %v1016
      %v1089 = vunpack.c.h.b16 %v1016
      %v1090 = vunpack.c.l.b16 %v1017
      %v1091 = vunpack.c.h.b16 %v1017
      %v1092 = vunpack.c.l.b16 %v1018
      %v1093 = vunpack.c.h.b16 %v1018
      %v1094 = vunpack.c.l.b16 %v1019
      %v1095 = vunpack.c.h.b16 %v1019
      %v1096 = vunpack.c.l.b16 %v1020
      %v1097 = vunpack.c.h.b16 %v1020
      %v1098 = vunpack.c.l.b16 %v1021
      %v1099 = vunpack.c.h.b16 %v1021
      %v1100 = vunpack.c.l.b16 %v1022
      %v1101 = vunpack.c.h.b16 %v1022
      %v1102 = vunpack.c.l.b16 %v1023
      %v1103 = vunpack.c.h.b16 %v1023
      %v1104 = vunpack.c.l.b16 %v1024
      %v1105 = vunpack.c.h.b16 %v1024
      %v1106 = vunpack.c.l.b16 %v1025
      %v1107 = vunpack.c.h.b16 %v1025
      %v1108 = vunpack.c.l.b16 %v1026
      %v1109 = vunpack.c.h.b16 %v1026
      %v1110 = vunpack.c.l.b16 %v1027
      %v1111 = vunpack.c.h.b16 %v1027
      %v1112 = vunpack.c.l.b16 %v1028
      %v1113 = vunpack.c.h.b16 %v1028
      %v1114 = vunpack.c.l.b16 %v1029
      %v1115 = vunpack.c.h.b16 %v1029
      %v1116 = vunpack.c.l.b16 %v1030
      %v1117 = vunpack.c.h.b16 %v1030
      %v1118 = vunpack.c.l.b16 %v1031
      %v1119 = vunpack.c.h.b16 %v1031
      %v1120 = vunpack.c.l.b16 %v1032
      %v1121 = vunpack.c.h.b16 %v1032
      %v1122 = vunpack.c.l.b16 %v1033
      %v1123 = vunpack.c.h.b16 %v1033
      %v1124 = vunpack.c.l.b16 %v1034
      %v1125 = vunpack.c.h.b16 %v1034
      %v1126 = vunpack.c.l.b16 %v1035
      %v1127 = vunpack.c.h.b16 %v1035
      %v1128 = vunpack.c.l.b16 %v1036
      %v1129 = vunpack.c.h.b16 %v1036
      %v1130 = vunpack.c.l.b16 %v1037
      %v1131 = vunpack.c.h.b16 %v1037
      %v1132 = vunpack.c.l.b16 %v1038
      %v1133 = vunpack.c.h.b16 %v1038
      %v1134 = vunpack.c.l.b16 %v1039
      %v1135 = vunpack.c.h.b16 %v1039
      %v1136 = vpack.c.b16 %v1074, %v1072
      %v1137 = vpack.c.b16 %v1075, %v1073
      %v1138 = vpack.c.b16 %v1078, %v1076
      %v1139 = vpack.c.b16 %v1079, %v1077
      %v1140 = vpack.c.b16 %v1082, %v1080
      %v1141 = vpack.c.b16 %v1083, %v1081
      %v1142 = vpack.c.b16 %v1086, %v1084
      %v1143 = vpack.c.b16 %v1087, %v1085
      %v1144 = vpack.c.b16 %v1090, %v1088
      %v1145 = vpack.c.b16 %v1091, %v1089
      %v1146 = vpack.c.b16 %v1094, %v1092
      %v1147 = vpack.c.b16 %v1095, %v1093
      %v1148 = vpack.c.b16 %v1098, %v1096
      %v1149 = vpack.c.b16 %v1099, %v1097
      %v1150 = vpack.c.b16 %v1102, %v1100
      %v1151 = vpack.c.b16 %v1103, %v1101
      %v1152 = vpack.c.b16 %v1106, %v1104
      %v1153 = vpack.c.b16 %v1107, %v1105
      %v1154 = vpack.c.b16 %v1110, %v1108
      %v1155 = vpack.c.b16 %v1111, %v1109
      %v1156 = vpack.c.b16 %v1114, %v1112
      %v1157 = vpack.c.b16 %v1115, %v1113
      %v1158 = vpack.c.b16 %v1118, %v1116
      %v1159 = vpack.c.b16 %v1119, %v1117
      %v1160 = vpack.c.b16 %v1122, %v1120
      %v1161 = vpack.c.b16 %v1123, %v1121
      %v1162 = vpack.c.b16 %v1126, %v1124
      %v1163 = vpack.c.b16 %v1127, %v1125
      %v1164 = vpack.c.b16 %v1130, %v1128
      %v1165 = vpack.c.b16 %v1131, %v1129
      %v1166 = vpack.c.b16 %v1134, %v1132
      %v1167 = vpack.c.b16 %v1135, %v1133
      %1200 = vmatprep.subr.bf16.mxu0 %v1137
      %1201 = vmatpush1.bf16.msra.mxu0 %v1136
      %1202 = vmatprep.subr.bf16.mxu0 %v1139
      %1203 = vmatpush1.bf16.msra.mxu0 %v1138
      %1204 = vmatprep.subr.bf16.mxu0 %v1141
      %1205 = vmatpush1.bf16.msra.mxu0 %v1140
      %1206 = vmatprep.subr.bf16.mxu0 %v1143
      %1207 = vmatpush1.bf16.msra.mxu0 %v1142
      %1208 = vmatprep.subr.bf16.mxu0 %v1145
      %1209 = vmatpush1.bf16.msra.mxu0 %v1144
      %1210 = vmatprep.subr.bf16.mxu0 %v1147
      %1211 = vmatpush1.bf16.msra.mxu0 %v1146
      %1212 = vmatprep.subr.bf16.mxu0 %v1149
      %1213 = vmatpush1.bf16.msra.mxu0 %v1148
      %1214 = vmatprep.subr.bf16.mxu0 %v1151
      %1215 = vmatpush1.bf16.msra.mxu0 %v1150
      %1216 = vmatprep.subr.bf16.mxu0 %v1153
      %1217 = vmatpush1.bf16.msra.mxu0 %v1152
      %1218 = vmatprep.subr.bf16.mxu0 %v1155
      %1219 = vmatpush1.bf16.msra.mxu0 %v1154
      %1220 = vmatprep.subr.bf16.mxu0 %v1157
      %1221 = vmatpush1.bf16.msra.mxu0 %v1156
      %1222 = vmatprep.subr.bf16.mxu0 %v1159
      %1223 = vmatpush1.bf16.msra.mxu0 %v1158
      %1224 = vmatprep.subr.bf16.mxu0 %v1161
      %1225 = vmatpush1.bf16.msra.mxu0 %v1160
      %1226 = vmatprep.subr.bf16.mxu0 %v1163
      %1227 = vmatpush1.bf16.msra.mxu0 %v1162
      %1228 = vmatprep.subr.bf16.mxu0 %v1165
      %1229 = vmatpush1.bf16.msra.mxu0 %v1164
      %1230 = vmatprep.subr.bf16.mxu0 %v1167
      %1231 = vmatpush1.bf16.msra.mxu0 %v1166
      %1232 = vmatprep.mubr.bf16.mxu0 %v469
      %1233 = vmatmul.mubr.bf16.gmra.mrb[0].mxu0 %v468
      %v1234 = vpop.f32.mrb[0].mxu0
      %v1235 = vadd.f32 0.0, %v1234
      %v1236 = vpop.f32.mrb[0].mxu0
      %v1237 = vadd.f32 0.0, %v1236
      %v1238 = vpop.f32.mrb[0].mxu0
      %v1239 = vadd.f32 0.0, %v1238
      %v1240 = vpop.f32.mrb[0].mxu0
      %v1241 = vadd.f32 0.0, %v1240
      %1242 = vmatprep.mubr.bf16.mxu0 %v471
      %1243 = vmatmul.mubr.bf16.gmra.mrb[0].mxu0 %v470
      %v1244 = vpop.f32.mrb[0].mxu0
      %v1245 = vadd.f32 0.0, %v1244
      %v1246 = vpop.f32.mrb[0].mxu0
      %v1247 = vadd.f32 0.0, %v1246
      %v1248 = vpop.f32.mrb[0].mxu0
      %v1249 = vadd.f32 0.0, %v1248
      %v1250 = vpop.f32.mrb[0].mxu0
      %v1251 = vadd.f32 0.0, %v1250
      %1252 = vmatprep.mubr.bf16.mxu0 %v473
      %1253 = vmatmul.mubr.bf16.gmra.mrb[0].mxu0 %v472
      %v1254 = vpop.f32.mrb[0].mxu0
      %v1255 = vadd.f32 0.0, %v1254
      %v1256 = vpop.f32.mrb[0].mxu0
      %v1257 = vadd.f32 0.0, %v1256
      %v1258 = vpop.f32.mrb[0].mxu0
      %v1259 = vadd.f32 0.0, %v1258
      %v1260 = vpop.f32.mrb[0].mxu0
      %v1261 = vadd.f32 0.0, %v1260
      %1262 = vmatprep.mubr.bf16.mxu0 %v475
      %1263 = vmatmul.mubr.bf16.gmra.mrb[0].mxu0 %v474
      %v1264 = vpop.f32.mrb[0].mxu0
      %v1265 = vadd.f32 0.0, %v1264
      %v1266 = vpop.f32.mrb[0].mxu0
      %v1267 = vadd.f32 0.0, %v1266
      %v1268 = vpop.f32.mrb[0].mxu0
      %v1269 = vadd.f32 0.0, %v1268
      %v1270 = vpop.f32.mrb[0].mxu0
      %v1271 = vadd.f32 0.0, %v1270
      %1272 = vdwg.mxu0
      %v1273 = vadd.f32 %v969, %v1235
      %v1274 = vadd.f32 %v971, %v1237
      %v1275 = vadd.f32 %v973, %v1239
      %v1276 = vadd.f32 %v975, %v1241
      %v1277 = vadd.f32 %v979, %v1245
      %v1278 = vadd.f32 %v981, %v1247
      %v1279 = vadd.f32 %v983, %v1249
      %v1280 = vadd.f32 %v985, %v1251
      %v1281 = vadd.f32 %v989, %v1255
      %v1282 = vadd.f32 %v991, %v1257
      %v1283 = vadd.f32 %v993, %v1259
      %v1284 = vadd.f32 %v995, %v1261
      %v1285 = vadd.f32 %v999, %v1265
      %v1286 = vadd.f32 %v1001, %v1267
      %v1287 = vadd.f32 %v1003, %v1269
      %v1288 = vadd.f32 %v1005, %v1271
      %v1289 = vld [vmem:[%s2] sm:$0x3]
      %v1291 = vlaneseq
      %v1292 = vshrl.u32 %v1291, 7
      %v1293 = vsub.s32 0, %v1292
      %v1294 = vrot.slane %v1289, %v1293
      %v1295 = vlaneseq
      %v1296 = vshrl.u32 %v1295, 7
      %v1297 = vsub.s32 1, %v1296
      %v1298 = vrot.slane %v1289, %v1297
      %v1301 = vadd.f32 %v1273, %v1294
      %v1302 = vadd.f32 %v1274, %v1298
      %v1303 = vadd.f32 %v1275, %v1294
      %v1304 = vadd.f32 %v1276, %v1298
      %v1305 = vadd.f32 %v1277, %v1294
      %v1306 = vadd.f32 %v1278, %v1298
      %v1307 = vadd.f32 %v1279, %v1294
      %v1308 = vadd.f32 %v1280, %v1298
      %v1309 = vadd.f32 %v1281, %v1294
      %v1310 = vadd.f32 %v1282, %v1298
      %v1311 = vadd.f32 %v1283, %v1294
      %v1312 = vadd.f32 %v1284, %v1298
      %v1313 = vadd.f32 %v1285, %v1294
      %v1314 = vadd.f32 %v1286, %v1298
      %v1315 = vadd.f32 %v1287, %v1294
      %v1316 = vadd.f32 %v1288, %v1298
      %v1317 = vmax.f32 %v1301, 0.0
      %v1318 = vmax.f32 %v1302, 0.0
      %v1319 = vmax.f32 %v1303, 0.0
      %v1320 = vmax.f32 %v1304, 0.0
      %v1321 = vmax.f32 %v1305, 0.0
      %v1322 = vmax.f32 %v1306, 0.0
      %v1323 = vmax.f32 %v1307, 0.0
      %v1324 = vmax.f32 %v1308, 0.0
      %v1325 = vmax.f32 %v1309, 0.0
      %v1326 = vmax.f32 %v1310, 0.0
      %v1327 = vmax.f32 %v1311, 0.0
      %v1328 = vmax.f32 %v1312, 0.0
      %v1329 = vmax.f32 %v1313, 0.0
      %v1330 = vmax.f32 %v1314, 0.0
      %v1331 = vmax.f32 %v1315, 0.0
      %v1332 = vmax.f32 %v1316, 0.0
      %v1333 = vpack.c.bf16 %v1319, %v1317
      %v1334 = vpack.c.bf16 %v1320, %v1318
      %v1335 = vpack.c.bf16 %v1323, %v1321
      %v1336 = vpack.c.bf16 %v1324, %v1322
      %v1337 = vpack.c.bf16 %v1327, %v1325
      %v1338 = vpack.c.bf16 %v1328, %v1326
      %v1339 = vpack.c.bf16 %v1331, %v1329
      %v1340 = vpack.c.bf16 %v1332, %v1330
      %v1342 = vshrl.u32 %v1333, 16
      %v1344 = vrot.slane %v1342, 7
      %v1345 = vshll.u32 %v1333, 16
      %v1347 = vor.u32 %v1344, %v1345
      %v1349 = vshrl.u32 %v1334, 16
      %v1351 = vrot.slane %v1349, 7
      %v1352 = vshll.u32 %v1334, 16
      %v1354 = vor.u32 %v1351, %v1352
      %v1356 = vshrl.u32 %v1335, 16
      %v1358 = vrot.slane %v1356, 7
      %v1359 = vshll.u32 %v1335, 16
      %v1361 = vor.u32 %v1358, %v1359
      %v1363 = vshrl.u32 %v1336, 16
      %v1365 = vrot.slane %v1363, 7
      %v1366 = vshll.u32 %v1336, 16
      %v1368 = vor.u32 %v1365, %v1366
      %v1370 = vshrl.u32 %v1337, 16
      %v1372 = vrot.slane %v1370, 7
      %v1373 = vshll.u32 %v1337, 16
      %v1375 = vor.u32 %v1372, %v1373
      %v1377 = vshrl.u32 %v1338, 16
      %v1379 = vrot.slane %v1377, 7
      %v1380 = vshll.u32 %v1338, 16
      %v1382 = vor.u32 %v1379, %v1380
      %v1384 = vshrl.u32 %v1339, 16
      %v1386 = vrot.slane %v1384, 7
      %v1387 = vshll.u32 %v1339, 16
      %v1389 = vor.u32 %v1386, %v1387
      %v1391 = vshrl.u32 %v1340, 16
      %v1393 = vrot.slane %v1391, 7
      %v1394 = vshll.u32 %v1340, 16
      %v1396 = vor.u32 %v1393, %v1394
      %v1405 = vsel %vm432, 0, %v1347
      %v1406 = vsel %vm432, 0, %v1354
      %v1407 = vsel %vm432, 0, %v1361
      %v1408 = vsel %vm432, 0, %v1368
      %v1409 = vsel %vm432, 0, %v1375
      %v1410 = vsel %vm432, 0, %v1382
      %v1411 = vsel %vm432, 0, %v1389
      %v1412 = vsel %vm432, 0, %v1396
      %v1413 = vrot.slane %v1345, 1
      %v1414 = vor.u32 %v1342, %v1413
      %v1415 = vrot.slane %v1352, 1
      %v1416 = vor.u32 %v1349, %v1415
      %v1417 = vrot.slane %v1359, 1
      %v1418 = vor.u32 %v1356, %v1417
      %v1419 = vrot.slane %v1366, 1
      %v1420 = vor.u32 %v1363, %v1419
      %v1421 = vrot.slane %v1373, 1
      %v1422 = vor.u32 %v1370, %v1421
      %v1423 = vrot.slane %v1380, 1
      %v1424 = vor.u32 %v1377, %v1423
      %v1425 = vrot.slane %v1387, 1
      %v1426 = vor.u32 %v1384, %v1425
      %v1427 = vrot.slane %v1394, 1
      %v1428 = vor.u32 %v1391, %v1427
      %v1437 = vsel %vm467, %v1414, 0
      %v1438 = vsel %vm467, %v1416, 0
      %v1439 = vsel %vm467, %v1418, 0
      %v1440 = vsel %vm467, %v1420, 0
      %v1441 = vsel %vm467, %v1422, 0
      %v1442 = vsel %vm467, %v1424, 0
      %v1443 = vsel %vm467, %v1426, 0
      %v1444 = vsel %vm467, %v1428, 0
      %v1445 = vld [vmem:[%s3] sm:$0xff]
      %v1446 = vld [vmem:[%s3 + $0x8] sm:$0xff]
      %v1447 = vld [vmem:[%s3 + $0x10] sm:$0xff]
      %v1448 = vld [vmem:[%s3 + $0x18] sm:$0xff]
      %v1449 = vld [vmem:[%s3 + $0x20] sm:$0xff]
      %v1450 = vld [vmem:[%s3 + $0x28] sm:$0xff]
      %v1451 = vld [vmem:[%s3 + $0x30] sm:$0xff]
      %v1452 = vld [vmem:[%s3 + $0x38] sm:$0xff]
      %v1453 = vld [vmem:[%s3 + $0x40] sm:$0xff]
      %v1454 = vld [vmem:[%s3 + $0x48] sm:$0xff]
      %v1455 = vld [vmem:[%s3 + $0x50] sm:$0xff]
      %v1456 = vld [vmem:[%s3 + $0x58] sm:$0xff]
      %v1457 = vld [vmem:[%s3 + $0x60] sm:$0xff]
      %v1458 = vld [vmem:[%s3 + $0x68] sm:$0xff]
      %v1459 = vld [vmem:[%s3 + $0x70] sm:$0xff]
      %v1460 = vld [vmem:[%s3 + $0x78] sm:$0xff]
      %v1461 = vld [vmem:[%s3 + $0x80] sm:$0xff]
      %v1462 = vld [vmem:[%s3 + $0x88] sm:$0xff]
      %v1463 = vld [vmem:[%s3 + $0x90] sm:$0xff]
      %v1464 = vld [vmem:[%s3 + $0x98] sm:$0xff]
      %v1465 = vld [vmem:[%s3 + $0xa0] sm:$0xff]
      %v1466 = vld [vmem:[%s3 + $0xa8] sm:$0xff]
      %v1467 = vld [vmem:[%s3 + $0xb0] sm:$0xff]
      %v1468 = vld [vmem:[%s3 + $0xb8] sm:$0xff]
      %v1469 = vld [vmem:[%s3 + $0xc0] sm:$0xff]
      %v1470 = vld [vmem:[%s3 + $0xc8] sm:$0xff]
      %v1471 = vld [vmem:[%s3 + $0xd0] sm:$0xff]
      %v1472 = vld [vmem:[%s3 + $0xd8] sm:$0xff]
      %v1473 = vld [vmem:[%s3 + $0xe0] sm:$0xff]
      %v1474 = vld [vmem:[%s3 + $0xe8] sm:$0xff]
      %v1475 = vld [vmem:[%s3 + $0xf0] sm:$0xff]
      %v1476 = vld [vmem:[%s3 + $0xf8] sm:$0xff]
      %s1477 = scalar_lea.vmem %s3, 256
      %v1478 = vld [vmem:[%s1477] sm:$0xff]
      %v1479 = vld [vmem:[%s1477 + $0x8] sm:$0xff]
      %v1480 = vld [vmem:[%s1477 + $0x10] sm:$0xff]
      %v1481 = vld [vmem:[%s1477 + $0x18] sm:$0xff]
      %v1482 = vld [vmem:[%s1477 + $0x20] sm:$0xff]
      %v1483 = vld [vmem:[%s1477 + $0x28] sm:$0xff]
      %v1484 = vld [vmem:[%s1477 + $0x30] sm:$0xff]
      %v1485 = vld [vmem:[%s1477 + $0x38] sm:$0xff]
      %v1486 = vld [vmem:[%s1477 + $0x40] sm:$0xff]
      %v1487 = vld [vmem:[%s1477 + $0x48] sm:$0xff]
      %v1488 = vld [vmem:[%s1477 + $0x50] sm:$0xff]
      %v1489 = vld [vmem:[%s1477 + $0x58] sm:$0xff]
      %v1490 = vld [vmem:[%s1477 + $0x60] sm:$0xff]
      %v1491 = vld [vmem:[%s1477 + $0x68] sm:$0xff]
      %v1492 = vld [vmem:[%s1477 + $0x70] sm:$0xff]
      %v1493 = vld [vmem:[%s1477 + $0x78] sm:$0xff]
      %v1494 = vld [vmem:[%s1477 + $0x80] sm:$0xff]
      %v1495 = vld [vmem:[%s1477 + $0x88] sm:$0xff]
      %v1496 = vld [vmem:[%s1477 + $0x90] sm:$0xff]
      %v1497 = vld [vmem:[%s1477 + $0x98] sm:$0xff]
      %v1498 = vld [vmem:[%s1477 + $0xa0] sm:$0xff]
      %v1499 = vld [vmem:[%s1477 + $0xa8] sm:$0xff]
      %v1500 = vld [vmem:[%s1477 + $0xb0] sm:$0xff]
      %v1501 = vld [vmem:[%s1477 + $0xb8] sm:$0xff]
      %v1502 = vld [vmem:[%s1477 + $0xc0] sm:$0xff]
      %v1503 = vld [vmem:[%s1477 + $0xc8] sm:$0xff]
      %v1504 = vld [vmem:[%s1477 + $0xd0] sm:$0xff]
      %v1505 = vld [vmem:[%s1477 + $0xd8] sm:$0xff]
      %v1506 = vld [vmem:[%s1477 + $0xe0] sm:$0xff]
      %v1507 = vld [vmem:[%s1477 + $0xe8] sm:$0xff]
      %v1508 = vld [vmem:[%s1477 + $0xf0] sm:$0xff]
      %v1509 = vld [vmem:[%s1477 + $0xf8] sm:$0xff]
      %v1542 = vunpack.c.l.b16 %v1478
      %v1543 = vunpack.c.h.b16 %v1478
      %v1544 = vunpack.c.l.b16 %v1479
      %v1545 = vunpack.c.h.b16 %v1479
      %v1546 = vunpack.c.l.b16 %v1480
      %v1547 = vunpack.c.h.b16 %v1480
      %v1548 = vunpack.c.l.b16 %v1481
      %v1549 = vunpack.c.h.b16 %v1481
      %v1550 = vunpack.c.l.b16 %v1482
      %v1551 = vunpack.c.h.b16 %v1482
      %v1552 = vunpack.c.l.b16 %v1483
      %v1553 = vunpack.c.h.b16 %v1483
      %v1554 = vunpack.c.l.b16 %v1484
      %v1555 = vunpack.c.h.b16 %v1484
      %v1556 = vunpack.c.l.b16 %v1485
      %v1557 = vunpack.c.h.b16 %v1485
      %v1558 = vunpack.c.l.b16 %v1486
      %v1559 = vunpack.c.h.b16 %v1486
      %v1560 = vunpack.c.l.b16 %v1487
      %v1561 = vunpack.c.h.b16 %v1487
      %v1562 = vunpack.c.l.b16 %v1488
      %v1563 = vunpack.c.h.b16 %v1488
      %v1564 = vunpack.c.l.b16 %v1489
      %v1565 = vunpack.c.h.b16 %v1489
      %v1566 = vunpack.c.l.b16 %v1490
      %v1567 = vunpack.c.h.b16 %v1490
      %v1568 = vunpack.c.l.b16 %v1491
      %v1569 = vunpack.c.h.b16 %v1491
      %v1570 = vunpack.c.l.b16 %v1492
      %v1571 = vunpack.c.h.b16 %v1492
      %v1572 = vunpack.c.l.b16 %v1493
      %v1573 = vunpack.c.h.b16 %v1493
      %v1574 = vunpack.c.l.b16 %v1494
      %v1575 = vunpack.c.h.b16 %v1494
      %v1576 = vunpack.c.l.b16 %v1495
      %v1577 = vunpack.c.h.b16 %v1495
      %v1578 = vunpack.c.l.b16 %v1496
      %v1579 = vunpack.c.h.b16 %v1496
      %v1580 = vunpack.c.l.b16 %v1497
      %v1581 = vunpack.c.h.b16 %v1497
      %v1582 = vunpack.c.l.b16 %v1498
      %v1583 = vunpack.c.h.b16 %v1498
      %v1584 = vunpack.c.l.b16 %v1499
      %v1585 = vunpack.c.h.b16 %v1499
      %v1586 = vunpack.c.l.b16 %v1500
      %v1587 = vunpack.c.h.b16 %v1500
      %v1588 = vunpack.c.l.b16 %v1501
      %v1589 = vunpack.c.h.b16 %v1501
      %v1590 = vunpack.c.l.b16 %v1502
      %v1591 = vunpack.c.h.b16 %v1502
      %v1592 = vunpack.c.l.b16 %v1503
      %v1593 = vunpack.c.h.b16 %v1503
      %v1594 = vunpack.c.l.b16 %v1504
      %v1595 = vunpack.c.h.b16 %v1504
      %v1596 = vunpack.c.l.b16 %v1505
      %v1597 = vunpack.c.h.b16 %v1505
      %v1598 = vunpack.c.l.b16 %v1506
      %v1599 = vunpack.c.h.b16 %v1506
      %v1600 = vunpack.c.l.b16 %v1507
      %v1601 = vunpack.c.h.b16 %v1507
      %v1602 = vunpack.c.l.b16 %v1508
      %v1603 = vunpack.c.h.b16 %v1508
      %v1604 = vunpack.c.l.b16 %v1509
      %v1605 = vunpack.c.h.b16 %v1509
      %v1606 = vpack.c.b16 %v1544, %v1542
      %v1607 = vpack.c.b16 %v1545, %v1543
      %v1608 = vpack.c.b16 %v1548, %v1546
      %v1609 = vpack.c.b16 %v1549, %v1547
      %v1610 = vpack.c.b16 %v1552, %v1550
      %v1611 = vpack.c.b16 %v1553, %v1551
      %v1612 = vpack.c.b16 %v1556, %v1554
      %v1613 = vpack.c.b16 %v1557, %v1555
      %v1614 = vpack.c.b16 %v1560, %v1558
      %v1615 = vpack.c.b16 %v1561, %v1559
      %v1616 = vpack.c.b16 %v1564, %v1562
      %v1617 = vpack.c.b16 %v1565, %v1563
      %v1618 = vpack.c.b16 %v1568, %v1566
      %v1619 = vpack.c.b16 %v1569, %v1567
      %v1620 = vpack.c.b16 %v1572, %v1570
      %v1621 = vpack.c.b16 %v1573, %v1571
      %v1622 = vpack.c.b16 %v1576, %v1574
      %v1623 = vpack.c.b16 %v1577, %v1575
      %v1624 = vpack.c.b16 %v1580, %v1578
      %v1625 = vpack.c.b16 %v1581, %v1579
      %v1626 = vpack.c.b16 %v1584, %v1582
      %v1627 = vpack.c.b16 %v1585, %v1583
      %v1628 = vpack.c.b16 %v1588, %v1586
      %v1629 = vpack.c.b16 %v1589, %v1587
      %v1630 = vpack.c.b16 %v1592, %v1590
      %v1631 = vpack.c.b16 %v1593, %v1591
      %v1632 = vpack.c.b16 %v1596, %v1594
      %v1633 = vpack.c.b16 %v1597, %v1595
      %v1634 = vpack.c.b16 %v1600, %v1598
      %v1635 = vpack.c.b16 %v1601, %v1599
      %v1636 = vpack.c.b16 %v1604, %v1602
      %v1637 = vpack.c.b16 %v1605, %v1603
      %1670 = vmatprep.subr.bf16.mxu0 %v1607
      %1671 = vmatpush1.bf16.msra.mxu0 %v1606
      %1672 = vmatprep.subr.bf16.mxu0 %v1609
      %1673 = vmatpush1.bf16.msra.mxu0 %v1608
      %1674 = vmatprep.subr.bf16.mxu0 %v1611
      %1675 = vmatpush1.bf16.msra.mxu0 %v1610
      %1676 = vmatprep.subr.bf16.mxu0 %v1613
      %1677 = vmatpush1.bf16.msra.mxu0 %v1612
      %1678 = vmatprep.subr.bf16.mxu0 %v1615
      %1679 = vmatpush1.bf16.msra.mxu0 %v1614
      %1680 = vmatprep.subr.bf16.mxu0 %v1617
      %1681 = vmatpush1.bf16.msra.mxu0 %v1616
      %1682 = vmatprep.subr.bf16.mxu0 %v1619
      %1683 = vmatpush1.bf16.msra.mxu0 %v1618
      %1684 = vmatprep.subr.bf16.mxu0 %v1621
      %1685 = vmatpush1.bf16.msra.mxu0 %v1620
      %1686 = vmatprep.subr.bf16.mxu0 %v1623
      %1687 = vmatpush1.bf16.msra.mxu0 %v1622
      %1688 = vmatprep.subr.bf16.mxu0 %v1625
      %1689 = vmatpush1.bf16.msra.mxu0 %v1624
      %1690 = vmatprep.subr.bf16.mxu0 %v1627
      %1691 = vmatpush1.bf16.msra.mxu0 %v1626
      %1692 = vmatprep.subr.bf16.mxu0 %v1629
      %1693 = vmatpush1.bf16.msra.mxu0 %v1628
      %1694 = vmatprep.subr.bf16.mxu0 %v1631
      %1695 = vmatpush1.bf16.msra.mxu0 %v1630
      %1696 = vmatprep.subr.bf16.mxu0 %v1633
      %1697 = vmatpush1.bf16.msra.mxu0 %v1632
      %1698 = vmatprep.subr.bf16.mxu0 %v1635
      %1699 = vmatpush1.bf16.msra.mxu0 %v1634
      %1700 = vmatprep.subr.bf16.mxu0 %v1637
      %1701 = vmatpush1.bf16.msra.mxu0 %v1636
      %1702 = vmatprep.mubr.bf16.mxu0 %v1334
      %1703 = vmatmul.mubr.bf16.gmra.mrb[0].mxu0 %v1333
      %v1704 = vpop.f32.mrb[0].mxu0
      %v1705 = vadd.f32 0.0, %v1704
      %v1706 = vpop.f32.mrb[0].mxu0
      %v1707 = vadd.f32 0.0, %v1706
      %v1708 = vpop.f32.mrb[0].mxu0
      %v1709 = vadd.f32 0.0, %v1708
      %v1710 = vpop.f32.mrb[0].mxu0
      %v1711 = vadd.f32 0.0, %v1710
      %1712 = vmatprep.mubr.bf16.mxu0 %v1336
      %1713 = vmatmul.mubr.bf16.gmra.mrb[0].mxu0 %v1335
      %v1714 = vpop.f32.mrb[0].mxu0
      %v1715 = vadd.f32 0.0, %v1714
      %v1716 = vpop.f32.mrb[0].mxu0
      %v1717 = vadd.f32 0.0, %v1716
      %v1718 = vpop.f32.mrb[0].mxu0
      %v1719 = vadd.f32 0.0, %v1718
      %v1720 = vpop.f32.mrb[0].mxu0
      %v1721 = vadd.f32 0.0, %v1720
      %1722 = vmatprep.mubr.bf16.mxu0 %v1338
      %1723 = vmatmul.mubr.bf16.gmra.mrb[0].mxu0 %v1337
      %v1724 = vpop.f32.mrb[0].mxu0
      %v1725 = vadd.f32 0.0, %v1724
      %v1726 = vpop.f32.mrb[0].mxu0
      %v1727 = vadd.f32 0.0, %v1726
      %v1728 = vpop.f32.mrb[0].mxu0
      %v1729 = vadd.f32 0.0, %v1728
      %v1730 = vpop.f32.mrb[0].mxu0
      %v1731 = vadd.f32 0.0, %v1730
      %1732 = vmatprep.mubr.bf16.mxu0 %v1340
      %1733 = vmatmul.mubr.bf16.gmra.mrb[0].mxu0 %v1339
      %v1734 = vpop.f32.mrb[0].mxu0
      %v1735 = vadd.f32 0.0, %v1734
      %v1736 = vpop.f32.mrb[0].mxu0
      %v1737 = vadd.f32 0.0, %v1736
      %v1738 = vpop.f32.mrb[0].mxu0
      %v1739 = vadd.f32 0.0, %v1738
      %v1740 = vpop.f32.mrb[0].mxu0
      %v1741 = vadd.f32 0.0, %v1740
      %1742 = vdwg.mxu0
      %v1775 = vunpack.c.l.b16 %v1445
      %v1776 = vunpack.c.h.b16 %v1445
      %v1777 = vunpack.c.l.b16 %v1446
      %v1778 = vunpack.c.h.b16 %v1446
      %v1779 = vunpack.c.l.b16 %v1447
      %v1780 = vunpack.c.h.b16 %v1447
      %v1781 = vunpack.c.l.b16 %v1448
      %v1782 = vunpack.c.h.b16 %v1448
      %v1783 = vunpack.c.l.b16 %v1449
      %v1784 = vunpack.c.h.b16 %v1449
      %v1785 = vunpack.c.l.b16 %v1450
      %v1786 = vunpack.c.h.b16 %v1450
      %v1787 = vunpack.c.l.b16 %v1451
      %v1788 = vunpack.c.h.b16 %v1451
      %v1789 = vunpack.c.l.b16 %v1452
      %v1790 = vunpack.c.h.b16 %v1452
      %v1791 = vunpack.c.l.b16 %v1453
      %v1792 = vunpack.c.h.b16 %v1453
      %v1793 = vunpack.c.l.b16 %v1454
      %v1794 = vunpack.c.h.b16 %v1454
      %v1795 = vunpack.c.l.b16 %v1455
      %v1796 = vunpack.c.h.b16 %v1455
      %v1797 = vunpack.c.l.b16 %v1456
      %v1798 = vunpack.c.h.b16 %v1456
      %v1799 = vunpack.c.l.b16 %v1457
      %v1800 = vunpack.c.h.b16 %v1457
      %v1801 = vunpack.c.l.b16 %v1458
      %v1802 = vunpack.c.h.b16 %v1458
      %v1803 = vunpack.c.l.b16 %v1459
      %v1804 = vunpack.c.h.b16 %v1459
      %v1805 = vunpack.c.l.b16 %v1460
      %v1806 = vunpack.c.h.b16 %v1460
      %v1807 = vunpack.c.l.b16 %v1461
      %v1808 = vunpack.c.h.b16 %v1461
      %v1809 = vunpack.c.l.b16 %v1462
      %v1810 = vunpack.c.h.b16 %v1462
      %v1811 = vunpack.c.l.b16 %v1463
      %v1812 = vunpack.c.h.b16 %v1463
      %v1813 = vunpack.c.l.b16 %v1464
      %v1814 = vunpack.c.h.b16 %v1464
      %v1815 = vunpack.c.l.b16 %v1465
      %v1816 = vunpack.c.h.b16 %v1465
      %v1817 = vunpack.c.l.b16 %v1466
      %v1818 = vunpack.c.h.b16 %v1466
      %v1819 = vunpack.c.l.b16 %v1467
      %v1820 = vunpack.c.h.b16 %v1467
      %v1821 = vunpack.c.l.b16 %v1468
      %v1822 = vunpack.c.h.b16 %v1468
      %v1823 = vunpack.c.l.b16 %v1469
      %v1824 = vunpack.c.h.b16 %v1469
      %v1825 = vunpack.c.l.b16 %v1470
      %v1826 = vunpack.c.h.b16 %v1470
      %v1827 = vunpack.c.l.b16 %v1471
      %v1828 = vunpack.c.h.b16 %v1471
      %v1829 = vunpack.c.l.b16 %v1472
      %v1830 = vunpack.c.h.b16 %v1472
      %v1831 = vunpack.c.l.b16 %v1473
      %v1832 = vunpack.c.h.b16 %v1473
      %v1833 = vunpack.c.l.b16 %v1474
      %v1834 = vunpack.c.h.b16 %v1474
      %v1835 = vunpack.c.l.b16 %v1475
      %v1836 = vunpack.c.h.b16 %v1475
      %v1837 = vunpack.c.l.b16 %v1476
      %v1838 = vunpack.c.h.b16 %v1476
      %v1839 = vpack.c.b16 %v1777, %v1775
      %v1840 = vpack.c.b16 %v1778, %v1776
      %v1841 = vpack.c.b16 %v1781, %v1779
      %v1842 = vpack.c.b16 %v1782, %v1780
      %v1843 = vpack.c.b16 %v1785, %v1783
      %v1844 = vpack.c.b16 %v1786, %v1784
      %v1845 = vpack.c.b16 %v1789, %v1787
      %v1846 = vpack.c.b16 %v1790, %v1788
      %v1847 = vpack.c.b16 %v1793, %v1791
      %v1848 = vpack.c.b16 %v1794, %v1792
      %v1849 = vpack.c.b16 %v1797, %v1795
      %v1850 = vpack.c.b16 %v1798, %v1796
      %v1851 = vpack.c.b16 %v1801, %v1799
      %v1852 = vpack.c.b16 %v1802, %v1800
      %v1853 = vpack.c.b16 %v1805, %v1803
      %v1854 = vpack.c.b16 %v1806, %v1804
      %v1855 = vpack.c.b16 %v1809, %v1807
      %v1856 = vpack.c.b16 %v1810, %v1808
      %v1857 = vpack.c.b16 %v1813, %v1811
      %v1858 = vpack.c.b16 %v1814, %v1812
      %v1859 = vpack.c.b16 %v1817, %v1815
      %v1860 = vpack.c.b16 %v1818, %v1816
      %v1861 = vpack.c.b16 %v1821, %v1819
      %v1862 = vpack.c.b16 %v1822, %v1820
      %v1863 = vpack.c.b16 %v1825, %v1823
      %v1864 = vpack.c.b16 %v1826, %v1824
      %v1865 = vpack.c.b16 %v1829, %v1827
      %v1866 = vpack.c.b16 %v1830, %v1828
      %v1867 = vpack.c.b16 %v1833, %v1831
      %v1868 = vpack.c.b16 %v1834, %v1832
      %v1869 = vpack.c.b16 %v1837, %v1835
      %v1870 = vpack.c.b16 %v1838, %v1836
      %1903 = vmatprep.subr.bf16.mxu0 %v1840
      %1904 = vmatpush1.bf16.msra.mxu0 %v1839
      %1905 = vmatprep.subr.bf16.mxu0 %v1842
      %1906 = vmatpush1.bf16.msra.mxu0 %v1841
      %1907 = vmatprep.subr.bf16.mxu0 %v1844
      %1908 = vmatpush1.bf16.msra.mxu0 %v1843
      %1909 = vmatprep.subr.bf16.mxu0 %v1846
      %1910 = vmatpush1.bf16.msra.mxu0 %v1845
      %1911 = vmatprep.subr.bf16.mxu0 %v1848
      %1912 = vmatpush1.bf16.msra.mxu0 %v1847
      %1913 = vmatprep.subr.bf16.mxu0 %v1850
      %1914 = vmatpush1.bf16.msra.mxu0 %v1849
      %1915 = vmatprep.subr.bf16.mxu0 %v1852
      %1916 = vmatpush1.bf16.msra.mxu0 %v1851
      %1917 = vmatprep.subr.bf16.mxu0 %v1854
      %1918 = vmatpush1.bf16.msra.mxu0 %v1853
      %1919 = vmatprep.subr.bf16.mxu0 %v1856
      %1920 = vmatpush1.bf16.msra.mxu0 %v1855
      %1921 = vmatprep.subr.bf16.mxu0 %v1858
      %1922 = vmatpush1.bf16.msra.mxu0 %v1857
      %1923 = vmatprep.subr.bf16.mxu0 %v1860
      %1924 = vmatpush1.bf16.msra.mxu0 %v1859
      %1925 = vmatprep.subr.bf16.mxu0 %v1862
      %1926 = vmatpush1.bf16.msra.mxu0 %v1861
      %1927 = vmatprep.subr.bf16.mxu0 %v1864
      %1928 = vmatpush1.bf16.msra.mxu0 %v1863
      %1929 = vmatprep.subr.bf16.mxu0 %v1866
      %1930 = vmatpush1.bf16.msra.mxu0 %v1865
      %1931 = vmatprep.subr.bf16.mxu0 %v1868
      %1932 = vmatpush1.bf16.msra.mxu0 %v1867
      %1933 = vmatprep.subr.bf16.mxu0 %v1870
      %1934 = vmatpush1.bf16.msra.mxu0 %v1869
      %1935 = vmatprep.mubr.bf16.mxu0 %v1406
      %1936 = vmatmul.mubr.bf16.gmra.mrb[0].mxu0 %v1405
      %v1937 = vpop.f32.mrb[0].mxu0
      %v1938 = vadd.f32 %v1705, %v1937
      %v1939 = vpop.f32.mrb[0].mxu0
      %v1940 = vadd.f32 %v1707, %v1939
      %v1941 = vpop.f32.mrb[0].mxu0
      %v1942 = vadd.f32 %v1709, %v1941
      %v1943 = vpop.f32.mrb[0].mxu0
      %v1944 = vadd.f32 %v1711, %v1943
      %1945 = vmatprep.mubr.bf16.mxu0 %v1408
      %1946 = vmatmul.mubr.bf16.gmra.mrb[0].mxu0 %v1407
      %v1947 = vpop.f32.mrb[0].mxu0
      %v1948 = vadd.f32 %v1715, %v1947
      %v1949 = vpop.f32.mrb[0].mxu0
      %v1950 = vadd.f32 %v1717, %v1949
      %v1951 = vpop.f32.mrb[0].mxu0
      %v1952 = vadd.f32 %v1719, %v1951
      %v1953 = vpop.f32.mrb[0].mxu0
      %v1954 = vadd.f32 %v1721, %v1953
      %1955 = vmatprep.mubr.bf16.mxu0 %v1410
      %1956 = vmatmul.mubr.bf16.gmra.mrb[0].mxu0 %v1409
      %v1957 = vpop.f32.mrb[0].mxu0
      %v1958 = vadd.f32 %v1725, %v1957
      %v1959 = vpop.f32.mrb[0].mxu0
      %v1960 = vadd.f32 %v1727, %v1959
      %v1961 = vpop.f32.mrb[0].mxu0
      %v1962 = vadd.f32 %v1729, %v1961
      %v1963 = vpop.f32.mrb[0].mxu0
      %v1964 = vadd.f32 %v1731, %v1963
      %1965 = vmatprep.mubr.bf16.mxu0 %v1412
      %1966 = vmatmul.mubr.bf16.gmra.mrb[0].mxu0 %v1411
      %v1967 = vpop.f32.mrb[0].mxu0
      %v1968 = vadd.f32 %v1735, %v1967
      %v1969 = vpop.f32.mrb[0].mxu0
      %v1970 = vadd.f32 %v1737, %v1969
      %v1971 = vpop.f32.mrb[0].mxu0
      %v1972 = vadd.f32 %v1739, %v1971
      %v1973 = vpop.f32.mrb[0].mxu0
      %v1974 = vadd.f32 %v1741, %v1973
      %1975 = vdwg.mxu0
      %s1976 = scalar_lea.vmem %s3, 512
      %v1977 = vld [vmem:[%s1976] sm:$0xff]
      %v1978 = vld [vmem:[%s1976 + $0x8] sm:$0xff]
      %v1979 = vld [vmem:[%s1976 + $0x10] sm:$0xff]
      %v1980 = vld [vmem:[%s1976 + $0x18] sm:$0xff]
      %v1981 = vld [vmem:[%s1976 + $0x20] sm:$0xff]
      %v1982 = vld [vmem:[%s1976 + $0x28] sm:$0xff]
      %v1983 = vld [vmem:[%s1976 + $0x30] sm:$0xff]
      %v1984 = vld [vmem:[%s1976 + $0x38] sm:$0xff]
      %v1985 = vld [vmem:[%s1976 + $0x40] sm:$0xff]
      %v1986 = vld [vmem:[%s1976 + $0x48] sm:$0xff]
      %v1987 = vld [vmem:[%s1976 + $0x50] sm:$0xff]
      %v1988 = vld [vmem:[%s1976 + $0x58] sm:$0xff]
      %v1989 = vld [vmem:[%s1976 + $0x60] sm:$0xff]
      %v1990 = vld [vmem:[%s1976 + $0x68] sm:$0xff]
      %v1991 = vld [vmem:[%s1976 + $0x70] sm:$0xff]
      %v1992 = vld [vmem:[%s1976 + $0x78] sm:$0xff]
      %v1993 = vld [vmem:[%s1976 + $0x80] sm:$0xff]
      %v1994 = vld [vmem:[%s1976 + $0x88] sm:$0xff]
      %v1995 = vld [vmem:[%s1976 + $0x90] sm:$0xff]
      %v1996 = vld [vmem:[%s1976 + $0x98] sm:$0xff]
      %v1997 = vld [vmem:[%s1976 + $0xa0] sm:$0xff]
      %v1998 = vld [vmem:[%s1976 + $0xa8] sm:$0xff]
      %v1999 = vld [vmem:[%s1976 + $0xb0] sm:$0xff]
      %v2000 = vld [vmem:[%s1976 + $0xb8] sm:$0xff]
      %v2001 = vld [vmem:[%s1976 + $0xc0] sm:$0xff]
      %v2002 = vld [vmem:[%s1976 + $0xc8] sm:$0xff]
      %v2003 = vld [vmem:[%s1976 + $0xd0] sm:$0xff]
      %v2004 = vld [vmem:[%s1976 + $0xd8] sm:$0xff]
      %v2005 = vld [vmem:[%s1976 + $0xe0] sm:$0xff]
      %v2006 = vld [vmem:[%s1976 + $0xe8] sm:$0xff]
      %v2007 = vld [vmem:[%s1976 + $0xf0] sm:$0xff]
      %v2008 = vld [vmem:[%s1976 + $0xf8] sm:$0xff]
      %v2041 = vunpack.c.l.b16 %v1977
      %v2042 = vunpack.c.h.b16 %v1977
      %v2043 = vunpack.c.l.b16 %v1978
      %v2044 = vunpack.c.h.b16 %v1978
      %v2045 = vunpack.c.l.b16 %v1979
      %v2046 = vunpack.c.h.b16 %v1979
      %v2047 = vunpack.c.l.b16 %v1980
      %v2048 = vunpack.c.h.b16 %v1980
      %v2049 = vunpack.c.l.b16 %v1981
      %v2050 = vunpack.c.h.b16 %v1981
      %v2051 = vunpack.c.l.b16 %v1982
      %v2052 = vunpack.c.h.b16 %v1982
      %v2053 = vunpack.c.l.b16 %v1983
      %v2054 = vunpack.c.h.b16 %v1983
      %v2055 = vunpack.c.l.b16 %v1984
      %v2056 = vunpack.c.h.b16 %v1984
      %v2057 = vunpack.c.l.b16 %v1985
      %v2058 = vunpack.c.h.b16 %v1985
      %v2059 = vunpack.c.l.b16 %v1986
      %v2060 = vunpack.c.h.b16 %v1986
      %v2061 = vunpack.c.l.b16 %v1987
      %v2062 = vunpack.c.h.b16 %v1987
      %v2063 = vunpack.c.l.b16 %v1988
      %v2064 = vunpack.c.h.b16 %v1988
      %v2065 = vunpack.c.l.b16 %v1989
      %v2066 = vunpack.c.h.b16 %v1989
      %v2067 = vunpack.c.l.b16 %v1990
      %v2068 = vunpack.c.h.b16 %v1990
      %v2069 = vunpack.c.l.b16 %v1991
      %v2070 = vunpack.c.h.b16 %v1991
      %v2071 = vunpack.c.l.b16 %v1992
      %v2072 = vunpack.c.h.b16 %v1992
      %v2073 = vunpack.c.l.b16 %v1993
      %v2074 = vunpack.c.h.b16 %v1993
      %v2075 = vunpack.c.l.b16 %v1994
      %v2076 = vunpack.c.h.b16 %v1994
      %v2077 = vunpack.c.l.b16 %v1995
      %v2078 = vunpack.c.h.b16 %v1995
      %v2079 = vunpack.c.l.b16 %v1996
      %v2080 = vunpack.c.h.b16 %v1996
      %v2081 = vunpack.c.l.b16 %v1997
      %v2082 = vunpack.c.h.b16 %v1997
      %v2083 = vunpack.c.l.b16 %v1998
      %v2084 = vunpack.c.h.b16 %v1998
      %v2085 = vunpack.c.l.b16 %v1999
      %v2086 = vunpack.c.h.b16 %v1999
      %v2087 = vunpack.c.l.b16 %v2000
      %v2088 = vunpack.c.h.b16 %v2000
      %v2089 = vunpack.c.l.b16 %v2001
      %v2090 = vunpack.c.h.b16 %v2001
      %v2091 = vunpack.c.l.b16 %v2002
      %v2092 = vunpack.c.h.b16 %v2002
      %v2093 = vunpack.c.l.b16 %v2003
      %v2094 = vunpack.c.h.b16 %v2003
      %v2095 = vunpack.c.l.b16 %v2004
      %v2096 = vunpack.c.h.b16 %v2004
      %v2097 = vunpack.c.l.b16 %v2005
      %v2098 = vunpack.c.h.b16 %v2005
      %v2099 = vunpack.c.l.b16 %v2006
      %v2100 = vunpack.c.h.b16 %v2006
      %v2101 = vunpack.c.l.b16 %v2007
      %v2102 = vunpack.c.h.b16 %v2007
      %v2103 = vunpack.c.l.b16 %v2008
      %v2104 = vunpack.c.h.b16 %v2008
      %v2105 = vpack.c.b16 %v2043, %v2041
      %v2106 = vpack.c.b16 %v2044, %v2042
      %v2107 = vpack.c.b16 %v2047, %v2045
      %v2108 = vpack.c.b16 %v2048, %v2046
      %v2109 = vpack.c.b16 %v2051, %v2049
      %v2110 = vpack.c.b16 %v2052, %v2050
      %v2111 = vpack.c.b16 %v2055, %v2053
      %v2112 = vpack.c.b16 %v2056, %v2054
      %v2113 = vpack.c.b16 %v2059, %v2057
      %v2114 = vpack.c.b16 %v2060, %v2058
      %v2115 = vpack.c.b16 %v2063, %v2061
      %v2116 = vpack.c.b16 %v2064, %v2062
      %v2117 = vpack.c.b16 %v2067, %v2065
      %v2118 = vpack.c.b16 %v2068, %v2066
      %v2119 = vpack.c.b16 %v2071, %v2069
      %v2120 = vpack.c.b16 %v2072, %v2070
      %v2121 = vpack.c.b16 %v2075, %v2073
      %v2122 = vpack.c.b16 %v2076, %v2074
      %v2123 = vpack.c.b16 %v2079, %v2077
      %v2124 = vpack.c.b16 %v2080, %v2078
      %v2125 = vpack.c.b16 %v2083, %v2081
      %v2126 = vpack.c.b16 %v2084, %v2082
      %v2127 = vpack.c.b16 %v2087, %v2085
      %v2128 = vpack.c.b16 %v2088, %v2086
      %v2129 = vpack.c.b16 %v2091, %v2089
      %v2130 = vpack.c.b16 %v2092, %v2090
      %v2131 = vpack.c.b16 %v2095, %v2093
      %v2132 = vpack.c.b16 %v2096, %v2094
      %v2133 = vpack.c.b16 %v2099, %v2097
      %v2134 = vpack.c.b16 %v2100, %v2098
      %v2135 = vpack.c.b16 %v2103, %v2101
      %v2136 = vpack.c.b16 %v2104, %v2102
      %2169 = vmatprep.subr.bf16.mxu0 %v2106
      %2170 = vmatpush1.bf16.msra.mxu0 %v2105
      %2171 = vmatprep.subr.bf16.mxu0 %v2108
      %2172 = vmatpush1.bf16.msra.mxu0 %v2107
      %2173 = vmatprep.subr.bf16.mxu0 %v2110
      %2174 = vmatpush1.bf16.msra.mxu0 %v2109
      %2175 = vmatprep.subr.bf16.mxu0 %v2112
      %2176 = vmatpush1.bf16.msra.mxu0 %v2111
      %2177 = vmatprep.subr.bf16.mxu0 %v2114
      %2178 = vmatpush1.bf16.msra.mxu0 %v2113
      %2179 = vmatprep.subr.bf16.mxu0 %v2116
      %2180 = vmatpush1.bf16.msra.mxu0 %v2115
      %2181 = vmatprep.subr.bf16.mxu0 %v2118
      %2182 = vmatpush1.bf16.msra.mxu0 %v2117
      %2183 = vmatprep.subr.bf16.mxu0 %v2120
      %2184 = vmatpush1.bf16.msra.mxu0 %v2119
      %2185 = vmatprep.subr.bf16.mxu0 %v2122
      %2186 = vmatpush1.bf16.msra.mxu0 %v2121
      %2187 = vmatprep.subr.bf16.mxu0 %v2124
      %2188 = vmatpush1.bf16.msra.mxu0 %v2123
      %2189 = vmatprep.subr.bf16.mxu0 %v2126
      %2190 = vmatpush1.bf16.msra.mxu0 %v2125
      %2191 = vmatprep.subr.bf16.mxu0 %v2128
      %2192 = vmatpush1.bf16.msra.mxu0 %v2127
      %2193 = vmatprep.subr.bf16.mxu0 %v2130
      %2194 = vmatpush1.bf16.msra.mxu0 %v2129
      %2195 = vmatprep.subr.bf16.mxu0 %v2132
      %2196 = vmatpush1.bf16.msra.mxu0 %v2131
      %2197 = vmatprep.subr.bf16.mxu0 %v2134
      %2198 = vmatpush1.bf16.msra.mxu0 %v2133
      %2199 = vmatprep.subr.bf16.mxu0 %v2136
      %2200 = vmatpush1.bf16.msra.mxu0 %v2135
      %2201 = vmatprep.mubr.bf16.mxu0 %v1438
      %2202 = vmatmul.mubr.bf16.gmra.mrb[0].mxu0 %v1437
      %v2203 = vpop.f32.mrb[0].mxu0
      %v2204 = vadd.f32 0.0, %v2203
      %v2205 = vpop.f32.mrb[0].mxu0
      %v2206 = vadd.f32 0.0, %v2205
      %v2207 = vpop.f32.mrb[0].mxu0
      %v2208 = vadd.f32 0.0, %v2207
      %v2209 = vpop.f32.mrb[0].mxu0
      %v2210 = vadd.f32 0.0, %v2209
      %2211 = vmatprep.mubr.bf16.mxu0 %v1440
      %2212 = vmatmul.mubr.bf16.gmra.mrb[0].mxu0 %v1439
      %v2213 = vpop.f32.mrb[0].mxu0
      %v2214 = vadd.f32 0.0, %v2213
      %v2215 = vpop.f32.mrb[0].mxu0
      %v2216 = vadd.f32 0.0, %v2215
      %v2217 = vpop.f32.mrb[0].mxu0
      %v2218 = vadd.f32 0.0, %v2217
      %v2219 = vpop.f32.mrb[0].mxu0
      %v2220 = vadd.f32 0.0, %v2219
      %2221 = vmatprep.mubr.bf16.mxu0 %v1442
      %2222 = vmatmul.mubr.bf16.gmra.mrb[0].mxu0 %v1441
      %v2223 = vpop.f32.mrb[0].mxu0
      %v2224 = vadd.f32 0.0, %v2223
      %v2225 = vpop.f32.mrb[0].mxu0
      %v2226 = vadd.f32 0.0, %v2225
      %v2227 = vpop.f32.mrb[0].mxu0
      %v2228 = vadd.f32 0.0, %v2227
      %v2229 = vpop.f32.mrb[0].mxu0
      %v2230 = vadd.f32 0.0, %v2229
      %2231 = vmatprep.mubr.bf16.mxu0 %v1444
      %2232 = vmatmul.mubr.bf16.gmra.mrb[0].mxu0 %v1443
      %v2233 = vpop.f32.mrb[0].mxu0
      %v2234 = vadd.f32 0.0, %v2233
      %v2235 = vpop.f32.mrb[0].mxu0
      %v2236 = vadd.f32 0.0, %v2235
      %v2237 = vpop.f32.mrb[0].mxu0
      %v2238 = vadd.f32 0.0, %v2237
      %v2239 = vpop.f32.mrb[0].mxu0
      %v2240 = vadd.f32 0.0, %v2239
      %2241 = vdwg.mxu0
      %v2242 = vadd.f32 %v1938, %v2204
      %v2243 = vadd.f32 %v1940, %v2206
      %v2244 = vadd.f32 %v1942, %v2208
      %v2245 = vadd.f32 %v1944, %v2210
      %v2246 = vadd.f32 %v1948, %v2214
      %v2247 = vadd.f32 %v1950, %v2216
      %v2248 = vadd.f32 %v1952, %v2218
      %v2249 = vadd.f32 %v1954, %v2220
      %v2250 = vadd.f32 %v1958, %v2224
      %v2251 = vadd.f32 %v1960, %v2226
      %v2252 = vadd.f32 %v1962, %v2228
      %v2253 = vadd.f32 %v1964, %v2230
      %v2254 = vadd.f32 %v1968, %v2234
      %v2255 = vadd.f32 %v1970, %v2236
      %v2256 = vadd.f32 %v1972, %v2238
      %v2257 = vadd.f32 %v1974, %v2240
      %v2258 = vld [vmem:[%s4] sm:$0x3]
      %v2260 = vlaneseq
      %v2261 = vshrl.u32 %v2260, 7
      %v2262 = vsub.s32 0, %v2261
      %v2263 = vrot.slane %v2258, %v2262
      %v2264 = vlaneseq
      %v2265 = vshrl.u32 %v2264, 7
      %v2266 = vsub.s32 1, %v2265
      %v2267 = vrot.slane %v2258, %v2266
      %v2270 = vadd.f32 %v2242, %v2263
      %v2271 = vadd.f32 %v2243, %v2267
      %v2272 = vadd.f32 %v2244, %v2263
      %v2273 = vadd.f32 %v2245, %v2267
      %v2274 = vadd.f32 %v2246, %v2263
      %v2275 = vadd.f32 %v2247, %v2267
      %v2276 = vadd.f32 %v2248, %v2263
      %v2277 = vadd.f32 %v2249, %v2267
      %v2278 = vadd.f32 %v2250, %v2263
      %v2279 = vadd.f32 %v2251, %v2267
      %v2280 = vadd.f32 %v2252, %v2263
      %v2281 = vadd.f32 %v2253, %v2267
      %v2282 = vadd.f32 %v2254, %v2263
      %v2283 = vadd.f32 %v2255, %v2267
      %v2284 = vadd.f32 %v2256, %v2263
      %v2285 = vadd.f32 %v2257, %v2267
      %v2286 = vadd.f32 %v2270, %v2272
      %v2287 = vrot.slane %v2286, 4
      %v2288 = vadd.f32 %v2286, %v2287
      %v2289 = vrot.slane %v2288, 2
      %v2290 = vadd.f32 %v2288, %v2289
      %v2291 = vrot.slane %v2290, 1
      %v2292 = vadd.f32 %v2290, %v2291
      %v2293 = vadd.f32 %v2271, %v2273
      %v2294 = vrot.slane %v2293, 4
      %v2295 = vadd.f32 %v2293, %v2294
      %v2296 = vrot.slane %v2295, 2
      %v2297 = vadd.f32 %v2295, %v2296
      %v2298 = vrot.slane %v2297, 1
      %v2299 = vadd.f32 %v2297, %v2298
      %v2300 = vadd.f32 %v2274, %v2276
      %v2301 = vrot.slane %v2300, 4
      %v2302 = vadd.f32 %v2300, %v2301
      %v2303 = vrot.slane %v2302, 2
      %v2304 = vadd.f32 %v2302, %v2303
      %v2305 = vrot.slane %v2304, 1
      %v2306 = vadd.f32 %v2304, %v2305
      %v2307 = vadd.f32 %v2275, %v2277
      %v2308 = vrot.slane %v2307, 4
      %v2309 = vadd.f32 %v2307, %v2308
      %v2310 = vrot.slane %v2309, 2
      %v2311 = vadd.f32 %v2309, %v2310
      %v2312 = vrot.slane %v2311, 1
      %v2313 = vadd.f32 %v2311, %v2312
      %v2314 = vadd.f32 %v2278, %v2280
      %v2315 = vrot.slane %v2314, 4
      %v2316 = vadd.f32 %v2314, %v2315
      %v2317 = vrot.slane %v2316, 2
      %v2318 = vadd.f32 %v2316, %v2317
      %v2319 = vrot.slane %v2318, 1
      %v2320 = vadd.f32 %v2318, %v2319
      %v2321 = vadd.f32 %v2279, %v2281
      %v2322 = vrot.slane %v2321, 4
      %v2323 = vadd.f32 %v2321, %v2322
      %v2324 = vrot.slane %v2323, 2
      %v2325 = vadd.f32 %v2323, %v2324
      %v2326 = vrot.slane %v2325, 1
      %v2327 = vadd.f32 %v2325, %v2326
      %v2328 = vadd.f32 %v2282, %v2284
      %v2329 = vrot.slane %v2328, 4
      %v2330 = vadd.f32 %v2328, %v2329
      %v2331 = vrot.slane %v2330, 2
      %v2332 = vadd.f32 %v2330, %v2331
      %v2333 = vrot.slane %v2332, 1
      %v2334 = vadd.f32 %v2332, %v2333
      %v2335 = vadd.f32 %v2283, %v2285
      %v2336 = vrot.slane %v2335, 4
      %v2337 = vadd.f32 %v2335, %v2336
      %v2338 = vrot.slane %v2337, 2
      %v2339 = vadd.f32 %v2337, %v2338
      %v2340 = vrot.slane %v2339, 1
      %v2341 = vadd.f32 %v2339, %v2340
      %v2342 = vld [vmem:[%s5] sm:$0xff]
      %v2343 = vld [vmem:[%s5 + $0x8] sm:$0xff]
      %v2344 = vld [vmem:[%s5 + $0x10] sm:$0xff]
      %v2345 = vld [vmem:[%s5 + $0x18] sm:$0xff]
      %v2346 = vld [vmem:[%s5 + $0x20] sm:$0xff]
      %v2347 = vld [vmem:[%s5 + $0x28] sm:$0xff]
      %v2348 = vld [vmem:[%s5 + $0x30] sm:$0xff]
      %v2349 = vld [vmem:[%s5 + $0x38] sm:$0xff]
      %v2350 = vld [vmem:[%s5 + $0x40] sm:$0xff]
      %v2351 = vld [vmem:[%s5 + $0x48] sm:$0xff]
      %v2352 = vld [vmem:[%s5 + $0x50] sm:$0xff]
      %v2353 = vld [vmem:[%s5 + $0x58] sm:$0xff]
      %v2354 = vld [vmem:[%s5 + $0x60] sm:$0xff]
      %v2355 = vld [vmem:[%s5 + $0x68] sm:$0xff]
      %v2356 = vld [vmem:[%s5 + $0x70] sm:$0xff]
      %v2357 = vld [vmem:[%s5 + $0x78] sm:$0xff]
      %v2358 = vld [vmem:[%s5 + $0x80] sm:$0xff]
      %v2359 = vld [vmem:[%s5 + $0x88] sm:$0xff]
      %v2360 = vld [vmem:[%s5 + $0x90] sm:$0xff]
      %v2361 = vld [vmem:[%s5 + $0x98] sm:$0xff]
      %v2362 = vld [vmem:[%s5 + $0xa0] sm:$0xff]
      %v2363 = vld [vmem:[%s5 + $0xa8] sm:$0xff]
      %v2364 = vld [vmem:[%s5 + $0xb0] sm:$0xff]
      %v2365 = vld [vmem:[%s5 + $0xb8] sm:$0xff]
      %v2366 = vld [vmem:[%s5 + $0xc0] sm:$0xff]
      %v2367 = vld [vmem:[%s5 + $0xc8] sm:$0xff]
      %v2368 = vld [vmem:[%s5 + $0xd0] sm:$0xff]
      %v2369 = vld [vmem:[%s5 + $0xd8] sm:$0xff]
      %v2370 = vld [vmem:[%s5 + $0xe0] sm:$0xff]
      %v2371 = vld [vmem:[%s5 + $0xe8] sm:$0xff]
      %v2372 = vld [vmem:[%s5 + $0xf0] sm:$0xff]
      %v2373 = vld [vmem:[%s5 + $0xf8] sm:$0xff]
      %v2374 = vld [vmem:[%s6] sm:$0x1]
      %v2376 = vlaneseq
      %v2377 = vshrl.u32 %v2376, 7
      %v2378 = vsub.s32 0, %v2377
      %v2379 = vrot.slane %v2374, %v2378
      %vm2389 = vcmask 1041409
      %v2390 = vsel %vm2389, %v2306, %v2292
      %vm2391 = vcmask 1042434
      %v2392 = vsel %vm2391, %v2320, %v2390
      %vm2393 = vcmask 1043459
      %v2394 = vsel %vm2393, %v2334, %v2392
      %v2395 = vsel %vm2389, %v2313, %v2299
      %v2396 = vsel %vm2391, %v2327, %v2395
      %v2397 = vsel %vm2393, %v2341, %v2396
      %2400 = vmatprep.subr.mxu0 0.0
      %2401 = vmatpush1.msra.mxu0 %v2342
      %2402 = vmatprep.subr.mxu0 0.0
      %2403 = vmatpush1.msra.mxu0 %v2343
      %2404 = vmatprep.subr.mxu0 0.0
      %2405 = vmatpush1.msra.mxu0 %v2344
      %2406 = vmatprep.subr.mxu0 0.0
      %2407 = vmatpush1.msra.mxu0 %v2345
      %2408 = vmatprep.subr.mxu0 0.0
      %2409 = vmatpush1.msra.mxu0 %v2346
      %2410 = vmatprep.subr.mxu0 0.0
      %2411 = vmatpush1.msra.mxu0 %v2347
      %2412 = vmatprep.subr.mxu0 0.0
      %2413 = vmatpush1.msra.mxu0 %v2348
      %2414 = vmatprep.subr.mxu0 0.0
      %2415 = vmatpush1.msra.mxu0 %v2349
      %2416 = vmatprep.subr.mxu0 0.0
      %2417 = vmatpush1.msra.mxu0 %v2350
      %2418 = vmatprep.subr.mxu0 0.0
      %2419 = vmatpush1.msra.mxu0 %v2351
      %2420 = vmatprep.subr.mxu0 0.0
      %2421 = vmatpush1.msra.mxu0 %v2352
      %2422 = vmatprep.subr.mxu0 0.0
      %2423 = vmatpush1.msra.mxu0 %v2353
      %2424 = vmatprep.subr.mxu0 0.0
      %2425 = vmatpush1.msra.mxu0 %v2354
      %2426 = vmatprep.subr.mxu0 0.0
      %2427 = vmatpush1.msra.mxu0 %v2355
      %2428 = vmatprep.subr.mxu0 0.0
      %2429 = vmatpush1.msra.mxu0 %v2356
      %2430 = vmatprep.subr.mxu0 0.0
      %2431 = vmatpush1.msra.mxu0 %v2357
      %2432 = vmatprep.subr.mxu0 0.0
      %2433 = vmatpush1.msra.mxu0 %v2358
      %2434 = vmatprep.subr.mxu0 0.0
      %2435 = vmatpush1.msra.mxu0 %v2359
      %2436 = vmatprep.subr.mxu0 0.0
      %2437 = vmatpush1.msra.mxu0 %v2360
      %2438 = vmatprep.subr.mxu0 0.0
      %2439 = vmatpush1.msra.mxu0 %v2361
      %2440 = vmatprep.subr.mxu0 0.0
      %2441 = vmatpush1.msra.mxu0 %v2362
      %2442 = vmatprep.subr.mxu0 0.0
      %2443 = vmatpush1.msra.mxu0 %v2363
      %2444 = vmatprep.subr.mxu0 0.0
      %2445 = vmatpush1.msra.mxu0 %v2364
      %2446 = vmatprep.subr.mxu0 0.0
      %2447 = vmatpush1.msra.mxu0 %v2365
      %2448 = vmatprep.subr.mxu0 0.0
      %2449 = vmatpush1.msra.mxu0 %v2366
      %2450 = vmatprep.subr.mxu0 0.0
      %2451 = vmatpush1.msra.mxu0 %v2367
      %2452 = vmatprep.subr.mxu0 0.0
      %2453 = vmatpush1.msra.mxu0 %v2368
      %2454 = vmatprep.subr.mxu0 0.0
      %2455 = vmatpush1.msra.mxu0 %v2369
      %2456 = vmatprep.subr.mxu0 0.0
      %2457 = vmatpush1.msra.mxu0 %v2370
      %2458 = vmatprep.subr.mxu0 0.0
      %2459 = vmatpush1.msra.mxu0 %v2371
      %2460 = vmatprep.subr.mxu0 0.0
      %2461 = vmatpush1.msra.mxu0 %v2372
      %2462 = vmatprep.subr.mxu0 0.0
      %2463 = vmatpush1.msra.mxu0 %v2373
      %2464 = vmatprep.mubr.f32.mxu0 %v2397
      %2465 = vmatmul.mubr.f32.gmra.mrb[0].mxu0 %v2394
      %v2466 = vpop.f32.mrb[0].mxu0
      %v2467 = vadd.f32 %v2379, %v2466
      %v2468 = vpop.f32.mrb[0].mxu0
      %2469 = vdwg.mxu0
      %v2470 = vmax.f32 %v2467, 0.0
      %v2471 = vld [vmem:[%s7] sm:$0xff]
      %v2472 = vld [vmem:[%s8] sm:$0x3]
      %v2474 = vlaneseq
      %v2475 = vshrl.u32 %v2474, 7
      %v2476 = vsub.s32 0, %v2475
      %v2477 = vrot.slane %v2472, %v2476
      %v2478 = vlaneseq
      %v2479 = vshrl.u32 %v2478, 7
      %v2480 = vsub.s32 1, %v2479
      %v2481 = vrot.slane %v2472, %v2480
      %v2485 = vcombine.high %v2471, %v2471
      %vm2486 = vcmask 31744
      %v2488 = vsel %vm2486, %v2470, 0
      %vm2490 = vcmask 1043456
      %v2491 = vsel %vm2490, %v2471, 0
      %v2493 = vsel %vm2490, %v2485, 0
      %2495 = vmatprep.subr.mxu0 %v2493
      %2496 = vmatpush1.msra.mxu0 %v2491
      %2497 = vmatprep.subr.mxu0 0.0
      %2498 = vmatpush1.msra.mxu0 0.0
      %2499 = vmatprep.subr.mxu0 0.0
      %2500 = vmatpush1.msra.mxu0 0.0
      %2501 = vmatprep.subr.mxu0 0.0
      %2502 = vmatpush1.msra.mxu0 0.0
      %2503 = vmatprep.subr.mxu0 0.0
      %2504 = vmatpush1.msra.mxu0 0.0
      %2505 = vmatprep.subr.mxu0 0.0
      %2506 = vmatpush1.msra.mxu0 0.0
      %2507 = vmatprep.subr.mxu0 0.0
      %2508 = vmatpush1.msra.mxu0 0.0
      %2509 = vmatprep.subr.mxu0 0.0
      %2510 = vmatpush1.msra.mxu0 0.0
      %2511 = vmatprep.subr.mxu0 0.0
      %2512 = vmatpush1.msra.mxu0 0.0
      %2513 = vmatprep.subr.mxu0 0.0
      %2514 = vmatpush1.msra.mxu0 0.0
      %2515 = vmatprep.subr.mxu0 0.0
      %2516 = vmatpush1.msra.mxu0 0.0
      %2517 = vmatprep.subr.mxu0 0.0
      %2518 = vmatpush1.msra.mxu0 0.0
      %2519 = vmatprep.subr.mxu0 0.0
      %2520 = vmatpush1.msra.mxu0 0.0
      %2521 = vmatprep.subr.mxu0 0.0
      %2522 = vmatpush1.msra.mxu0 0.0
      %2523 = vmatprep.subr.mxu0 0.0
      %2524 = vmatpush1.msra.mxu0 0.0
      %2525 = vmatprep.subr.mxu0 0.0
      %2526 = vmatpush1.msra.mxu0 0.0
      %2527 = vmatprep.subr.mxu0 0.0
      %2528 = vmatpush1.msra.mxu0 0.0
      %2529 = vmatprep.subr.mxu0 0.0
      %2530 = vmatpush1.msra.mxu0 0.0
      %2531 = vmatprep.subr.mxu0 0.0
      %2532 = vmatpush1.msra.mxu0 0.0
      %2533 = vmatprep.subr.mxu0 0.0
      %2534 = vmatpush1.msra.mxu0 0.0
      %2535 = vmatprep.subr.mxu0 0.0
      %2536 = vmatpush1.msra.mxu0 0.0
      %2537 = vmatprep.subr.mxu0 0.0
      %2538 = vmatpush1.msra.mxu0 0.0
      %2539 = vmatprep.subr.mxu0 0.0
      %2540 = vmatpush1.msra.mxu0 0.0
      %2541 = vmatprep.subr.mxu0 0.0
      %2542 = vmatpush1.msra.mxu0 0.0
      %2543 = vmatprep.subr.mxu0 0.0
      %2544 = vmatpush1.msra.mxu0 0.0
      %2545 = vmatprep.subr.mxu0 0.0
      %2546 = vmatpush1.msra.mxu0 0.0
      %2547 = vmatprep.subr.mxu0 0.0
      %2548 = vmatpush1.msra.mxu0 0.0
      %2549 = vmatprep.subr.mxu0 0.0
      %2550 = vmatpush1.msra.mxu0 0.0
      %2551 = vmatprep.subr.mxu0 0.0
      %2552 = vmatpush1.msra.mxu0 0.0
      %2553 = vmatprep.subr.mxu0 0.0
      %2554 = vmatpush1.msra.mxu0 0.0
      %2555 = vmatprep.subr.mxu0 0.0
      %2556 = vmatpush1.msra.mxu0 0.0
      %2557 = vmatprep.subr.mxu0 0.0
      %2558 = vmatpush1.msra.mxu0 0.0
      %2559 = vmatprep.mubr.f32.mxu0 0.0
      %2560 = vmatmul.mubr.f32.gmra.mrb[0].mxu0 %v2488
      %v2561 = vpop.f32.mrb[0].mxu0
      %v2562 = vadd.f32 %v2477, %v2561
      %v2563 = vpop.f32.mrb[0].mxu0
      %v2564 = vadd.f32 %v2481, %v2563
      %2565 = vdwg.mxu0
      %v2566 = vxor.u32 %v2562, 2147483648
      %v2567 = vxor.u32 %v2564, 2147483648
      %v2568 = vmul.f32 %v2566, 1.442695
      %v2569 = vpow.pop %v2568
      %v2570 = vmul.f32 %v2567, 1.442695
      %v2571 = vpow.pop %v2570
      %v2572 = vadd.f32 %v2569, 1.0
      %v2573 = vadd.f32 %v2571, 1.0
      %v2574 = vrcp.pop %v2572
      %v2575 = vmul.f32 1.0, %v2574
      %v2576 = vrcp.pop %v2573
      %v2577 = vmul.f32 1.0, %v2576
      %v2580 = vcombine.low %v2575, %v2577
      %v2582 = vunpack.c.l.s4 1966171168
      %v2583 = vunpack.c.0.s8 %v2582
      %v2584 = vlaneseq
      %v2585 = vshrl.u32 %v2584, 7
      %v2586 = vsub.s32 %v2583, %v2585
      %v2587 = vrot.slane %v2580, %v2586
      %v2588 = vcombine.high %v2587, %v2587
      %v2590 = vunpack.c.l.s4 1966171168
      %v2591 = vunpack.c.0.s8 %v2590
      %v2592 = vlaneseq
      %v2593 = vshrl.u32 %v2592, 7
      %v2594 = vsub.s32 %v2591, %v2593
      %v2595 = vrot.slane %v2587, %v2594
      %v2597 = vunpack.c.l.s4 1966171168
      %v2598 = vunpack.c.0.s8 %v2597
      %v2599 = vlaneseq
      %v2600 = vshrl.u32 %v2599, 7
      %v2601 = vsub.s32 %v2598, %v2600
      %v2602 = vrot.slane %v2588, %v2601
      %v2603 = vcombine.high %v2595, %v2595
      %v2604 = vcombine.high %v2602, %v2602
      %v2605 = vlaneseq
      %v2606 = vshrl.u32 %v2605, 7
      %v2607 = vsub.s32 0, %v2606
      %v2608 = vrot.slane %v2595, %v2607
      %v2609 = vlaneseq
      %v2610 = vshrl.u32 %v2609, 7
      %v2611 = vsub.s32 1, %v2610
      %v2612 = vrot.slane %v2595, %v2611
      %v2613 = vlaneseq
      %v2614 = vshrl.u32 %v2613, 7
      %v2615 = vsub.s32 0, %v2614
      %v2616 = vrot.slane %v2602, %v2615
      %v2617 = vlaneseq
      %v2618 = vshrl.u32 %v2617, 7
      %v2619 = vsub.s32 1, %v2618
      %v2620 = vrot.slane %v2602, %v2619
      %v2621 = vlaneseq
      %v2622 = vshrl.u32 %v2621, 7
      %v2623 = vsub.s32 0, %v2622
      %v2624 = vrot.slane %v2603, %v2623
      %v2625 = vlaneseq
      %v2626 = vshrl.u32 %v2625, 7
      %v2627 = vsub.s32 1, %v2626
      %v2628 = vrot.slane %v2603, %v2627
      %v2629 = vlaneseq
      %v2630 = vshrl.u32 %v2629, 7
      %v2631 = vsub.s32 0, %v2630
      %v2632 = vrot.slane %v2604, %v2631
      %v2633 = vlaneseq
      %v2634 = vshrl.u32 %v2633, 7
      %v2635 = vsub.s32 1, %v2634
      %v2636 = vrot.slane %v2604, %v2635
      %v2645 = vmul.f32 %v2270, %v2608
      %v2646 = vmul.f32 %v2271, %v2612
      %v2647 = vmul.f32 %v2272, %v2608
      %v2648 = vmul.f32 %v2273, %v2612
      %v2649 = vmul.f32 %v2274, %v2616
      %v2650 = vmul.f32 %v2275, %v2620
      %v2651 = vmul.f32 %v2276, %v2616
      %v2652 = vmul.f32 %v2277, %v2620
      %v2653 = vmul.f32 %v2278, %v2624
      %v2654 = vmul.f32 %v2279, %v2628
      %v2655 = vmul.f32 %v2280, %v2624
      %v2656 = vmul.f32 %v2281, %v2628
      %v2657 = vmul.f32 %v2282, %v2632
      %v2658 = vmul.f32 %v2283, %v2636
      %v2659 = vmul.f32 %v2284, %v2632
      %v2660 = vmul.f32 %v2285, %v2636
      %v2661 = vadd.f32 %v2645, %v342
      %v2662 = vadd.f32 %v2646, %v343
      %v2663 = vadd.f32 %v2647, %v344
      %v2664 = vadd.f32 %v2648, %v345
      %v2665 = vadd.f32 %v2649, %v346
      %v2666 = vadd.f32 %v2650, %v347
      %v2667 = vadd.f32 %v2651, %v348
      %v2668 = vadd.f32 %v2652, %v349
      %v2669 = vadd.f32 %v2653, %v350
      %v2670 = vadd.f32 %v2654, %v351
      %v2671 = vadd.f32 %v2655, %v352
      %v2672 = vadd.f32 %v2656, %v353
      %v2673 = vadd.f32 %v2657, %v354
      %v2674 = vadd.f32 %v2658, %v355
      %v2675 = vadd.f32 %v2659, %v356
      %v2676 = vadd.f32 %v2660, %v357
      %2677 = vst [vmem:[%s339] sm:$0xff] %v2661
      %2678 = vst [vmem:[%s339 + $0x8] sm:$0xff] %v2662
      %2679 = vst [vmem:[%s339 + $0x10] sm:$0xff] %v2663
      %2680 = vst [vmem:[%s339 + $0x18] sm:$0xff] %v2664
      %2681 = vst [vmem:[%s339 + $0x20] sm:$0xff] %v2665
      %2682 = vst [vmem:[%s339 + $0x28] sm:$0xff] %v2666
      %2683 = vst [vmem:[%s339 + $0x30] sm:$0xff] %v2667
      %2684 = vst [vmem:[%s339 + $0x38] sm:$0xff] %v2668
      %2685 = vst [vmem:[%s339 + $0x40] sm:$0xff] %v2669
      %2686 = vst [vmem:[%s339 + $0x48] sm:$0xff] %v2670
      %2687 = vst [vmem:[%s339 + $0x50] sm:$0xff] %v2671
      %2688 = vst [vmem:[%s339 + $0x58] sm:$0xff] %v2672
      %2689 = vst [vmem:[%s339 + $0x60] sm:$0xff] %v2673
      %2690 = vst [vmem:[%s339 + $0x68] sm:$0xff] %v2674
      %2691 = vst [vmem:[%s339 + $0x70] sm:$0xff] %v2675
      %2692 = vst [vmem:[%s339 + $0x78] sm:$0xff] %v2676
      %s2693 = smul.u32 4, %s20
      %p2694 = scmp.lt.s32.totalorder %s2693, 7
      %s2695 = scalar_select %p2694, %s2693, 7
      %s2696 = smul.addr %s2695, 4
      %s2697 = smul.addr %s2696, 8
      %s2698 = scalar_lea.vmem %s9, %s2697
      // Predicated region
      $region57: #{rcab_forward.1} parent=55 // pred_check
        %p2699 = pneg %p232
      $region58: #{rcab_forward.1} parent=55 // pred_check_branch
        %2701 = sbr.rel (%p2699) target = $region60
      $region59: #{rcab_forward.1} parent=55 // pred_region
        %s2702 = smul.u32 4, %s20
      $region60: #{rcab_forward.1} parent=55 // pred_fallthru
        _
    $region56: #{rcab_forward.1} parent=5 // pred_fallthru
      _
    %p2703 = scmp.le.s32.totalorder 2, %s15
    // Predicated region
    $region61: #{rcab_forward.1} parent=5 // pred_check
      %p2704 = pneg %p2703
    $region62: #{rcab_forward.1} parent=5 // pred_check_branch
      %2706 = sbr.rel (%p2704) target = $region64
    $region63: #{rcab_forward.1} parent=5 // pred_region
      %s2707 = ssub.s32 %s15, 2
      // Predicated region
      $region65: #{rcab_forward.1} parent=63 // pred_check
        %p2708 = pneg %p238
      $region66: #{rcab_forward.1} parent=63 // pred_check_branch
        %2710 = sbr.rel (%p2708) target = $region68
      $region67: #{rcab_forward.1} parent=63 // pred_region
        %s2711 = smul.u32 4, %s21
        %p2712 = scmp.lt.s32.totalorder %s2711, 7
        %s2713 = scalar_select %p2712, %s2711, 7
        %s2714 = smul.addr %s2713, 4
        %s2715 = smul.addr %s2714, 8
        %s2716 = scalar_lea.vmem %s9, %s2715
      $region68: #{rcab_forward.1} parent=63 // pred_fallthru
        _
    $region64: #{rcab_forward.1} parent=5 // pred_fallthru
      _
  $region6: #{rcab_forward.1} parent=0 // loop_footer
    %s19 = sadd.s32 1, %s15
  $region7: #{rcab_forward.1} parent=0 // loop_footer_branch
    %14 = sbr.rel target = $region3
  $region8: #{rcab_forward.1} parent=0 // loop_exit
    _

</llo_original>
